<compile_context>
chip_gen: v7x
topology: tpu7x:2x2x1
jax: 0.10.0
libtpu: 0.0.40
codegen_flags: <defaults>
</compile_context>

<pallas_src>
import functools

import jax
import jax.numpy as jnp
from jax.experimental import pallas as pl
from jax.experimental.pallas import tpu as pltpu


def _cbam_fused_kernel(x_ref, w1_ref, b1_ref, w2_ref, b2_ref, planes_ref,
                       cb_ref, out_ref, *, shifts):
    # x_ref:      (Nb, C, HW)  channels on sublanes, flattened spatial on lanes
    # w1_ref:     (C, HID)     fc[0].weight.T       b1_ref: (1, HID)
    # w2_ref:     (C, HID)     fc[2].weight         b2_ref: (C, 1)
    # planes_ref: (49, 2, HW)  per-tap conv weight * boundary mask (grid-invariant)
    # cb_ref:     SMEM (1,)    conv bias
    # out_ref:    (Nb, C, HW)
    x = x_ref[...].astype(jnp.float32)                          # (Nb, C, HW)

    # ---------------- ChannelAttention -----------------------------------
    # AdaptiveAvgPool2d((1,1)) == mean over spatial positions (lane reduce).
    pooled = jnp.mean(x, axis=2, keepdims=True)                 # (Nb, C, 1)
    # fc[0]: Linear(C->HID)+ReLU, fc[2]: Linear(HID->C)+ReLU on the VPU
    # (broadcast-mul + reduce; no tiny per-step MXU matmul).
    h = jnp.sum(w1_ref[...] * pooled, axis=1, keepdims=True) + b1_ref[...]
    h = jnp.maximum(h, 0.0)                                     # (Nb, 1, HID)
    o = jnp.sum(w2_ref[...] * h, axis=2, keepdims=True) + b2_ref[...]
    o = jnp.maximum(o, 0.0)                                     # (Nb, C, 1)
    # Both branches use the (same) average pool -> avg_out + max_out == 2*o.
    ca = jax.nn.sigmoid(o + o)                                  # (Nb, C, 1)

    y = x * ca                                                  # x *= ChannelAttention(x)

    # ---------------- SpatialAttention ------------------------------------
    # Per-pixel mean / max over channels (sublane reduces), stacked so one
    # lane rotation serves both rows per tap.
    avg_m = jnp.mean(y, axis=1, keepdims=True)                  # (Nb, 1, HW)
    max_m = jnp.max(y, axis=1, keepdims=True)                   # (Nb, 1, HW)
    maps = jnp.concatenate([avg_m, max_m], axis=1)              # (Nb, 2, HW)

    # 7x7 "same" conv: one XLU roll per tap, premultiplied weight*mask planes,
    # 4 independent accumulators to break the serial add chain.
    n_acc = 4
    accs = [jnp.zeros_like(maps) for _ in range(n_acc)]
    for t, shift in enumerate(shifts):
        s = maps if shift == 0 else pltpu.roll(maps, shift, axis=2)
        accs[t % n_acc] = accs[t % n_acc] + planes_ref[t] * s
    acc = (accs[0] + accs[1]) + (accs[2] + accs[3])             # (Nb, 2, HW)
    conv = jnp.sum(acc, axis=1, keepdims=True) + cb_ref[0]      # (Nb, 1, HW)

    sa = jax.nn.sigmoid(conv)
    out_ref[...] = (y * sa).astype(out_ref.dtype)


def _build_tap_planes(cw, H, W):
    """(49, 2, H*W) f32: planes[t, c, p] = cw[0, c, r, k] * in_bounds(p, r, k)."""
    HW = H * W
    idx = jnp.arange(HW, dtype=jnp.int32)
    row = idx // W
    col = idx % W
    planes = []
    for ri, r in enumerate(range(-3, 4)):
        for ki, k in enumerate(range(-3, 4)):
            ok = ((row + r >= 0) & (row + r < H) &
                  (col + k >= 0) & (col + k < W)).astype(jnp.float32)
            planes.append(jnp.stack([cw[0, 0, ri, ki] * ok,
                                     cw[0, 1, ri, ki] * ok]))
    return jnp.stack(planes).astype(jnp.float32)                # (49, 2, HW)


def _pick_nb(N, C, HW, itemsize, vmem_budget_bytes=8 << 20):
    """Batch elements per grid step.

    Keeps the grid >= 2 steps whenever N >= 2 (so both v7x TensorCores stay
    busy under dimension_semantics=("parallel",)) and the double-buffered
    in + out blocks under a conservative VMEM budget (safe on v7x's 64 MiB).
    On single-TC v5e/v6e larger N folds into bigger blocks, amortizing the
    ~0.35 us per-grid-step pipeline overhead.
    """
    per_elem = 4 * C * HW * itemsize        # 2x double-buffered (in + out)
    best = 1
    for d in range(1, N + 1):
        if N % d:
            continue
        if N >= 2 and (N // d) < 2:
            continue
        if d * per_elem > vmem_budget_bytes:
            continue
        best = d
    return best


def cbam_forward(x, w1, b1, w2, b2, cw, cb, *, nb=None):
    """x: (N, C, H, W) NCHW.  Returns (N, C, H, W)."""
    N, C, H, W = x.shape
    HW = H * W
    HID = w1.shape[0]

    if nb is None:
        nb = _pick_nb(N, C, HW, jnp.dtype(x.dtype).itemsize)
    assert N % nb == 0, (N, nb)

    # rolled[p] = maps[p + off]  with off = r*W + k  ->  shift = (-off) % HW
    shifts = tuple((-(r * W + k)) % HW
                   for r in range(-3, 4) for k in range(-3, 4))
    planes = _build_tap_planes(cw, H, W)     # weight * boundary mask, once

    x3 = x.reshape(N, C, HW)                 # free reshape, no transpose

    out3 = pl.pallas_call(
        functools.partial(_cbam_fused_kernel, shifts=shifts),
        out_shape=jax.ShapeDtypeStruct((N, C, HW), x.dtype),
        grid=(N // nb,),
        in_specs=[
            pl.BlockSpec((nb, C, HW), lambda n: (n, 0, 0)),
            pl.BlockSpec((C, HID), lambda n: (0, 0)),
            pl.BlockSpec((1, HID), lambda n: (0, 0)),
            pl.BlockSpec((C, HID), lambda n: (0, 0)),
            pl.BlockSpec((C, 1), lambda n: (0, 0)),
            pl.BlockSpec((49, 2, HW), lambda n: (0, 0, 0)),
            pl.BlockSpec(memory_space=pltpu.MemorySpace.SMEM),
        ],
        out_specs=pl.BlockSpec((nb, C, HW), lambda n: (n, 0, 0)),
        compiler_params=pltpu.CompilerParams(
            dimension_semantics=("parallel",),
            vmem_limit_bytes=32 << 20,
        ),
    )(x3,
      jnp.transpose(w1),                     # (C, HID)   fc[0].weight.T
      b1.reshape(1, HID),
      w2,                                    # (C, HID)   fc[2].weight
      b2.reshape(C, 1),
      planes,
      cb)

    return out3.reshape(N, C, H, W)


def cbam_reference(x, w1, b1, w2, b2, cw, cb):
    """Pure-JAX reference with the same semantics (sanity check)."""
    pooled = jnp.mean(x, axis=(2, 3))                           # (N, C)

    def fc(p):
        h = jnp.maximum(p @ w1.T + b1, 0.0)
        return jnp.maximum(h @ w2.T + b2, 0.0)

    ca = jax.nn.sigmoid(fc(pooled) + fc(pooled))                # (N, C)
    x1 = x * ca[:, :, None, None]
    avg = jnp.mean(x1, axis=1, keepdims=True)
    mx = jnp.max(x1, axis=1, keepdims=True)
    m = jnp.concatenate([avg, mx], axis=1)                      # (N, 2, H, W)
    sa = jax.lax.conv_general_dilated(
        m, cw, window_strides=(1, 1), padding=[(3, 3), (3, 3)],
        dimension_numbers=("NCHW", "OIHW", "NCHW")) + cb.reshape(1, 1, 1, 1)
    sa = jax.nn.sigmoid(sa)
    return x1 * sa


if __name__ == "__main__":
    # in_channels == out_channels == 32, r = 16 -> hidden = 2
    N, C, H, W = 2, 32, 16, 16
    HID = C // 16

    key = jax.random.PRNGKey(0)
    ks = jax.random.split(key, 7)
    x = jax.random.normal(ks[0], (N, C, H, W), jnp.float32)
    w1 = jax.random.normal(ks[1], (HID, C), jnp.float32) * 0.1    # fc[0].weight
    b1 = jax.random.normal(ks[2], (HID,), jnp.float32) * 0.1      # fc[0].bias
    w2 = jax.random.normal(ks[3], (C, HID), jnp.float32) * 0.1    # fc[2].weight
    b2 = jax.random.normal(ks[4], (C,), jnp.float32) * 0.1        # fc[2].bias
    cw = jax.random.normal(ks[5], (1, 2, 7, 7), jnp.float32) * 0.1  # conv.weight
    cb = jax.random.normal(ks[6], (1,), jnp.float32) * 0.1          # conv.bias

    out = jax.block_until_ready(cbam_forward(x, w1, b1, w2, b2, cw, cb))
    ref = cbam_reference(x, w1, b1, w2, b2, cw, cb)
    assert out.shape == (N, C, H, W) and out.dtype == jnp.float32
    assert jnp.allclose(out, ref, atol=5e-5, rtol=5e-5), float(
        jnp.max(jnp.abs(out - ref)))
    print("KERNEL_OK")
</pallas_src>

<mosaic_0001>
module attributes {stable_mosaic.version = 11 : i64} {
  func.func @_cbam_fused_kernel(%arg0: i32, %arg1: memref<1x32x256xf32, #tpu.memory_space<vmem>>, %arg2: memref<32x2xf32, #tpu.memory_space<vmem>>, %arg3: memref<1x2xf32, #tpu.memory_space<vmem>>, %arg4: memref<32x2xf32, #tpu.memory_space<vmem>>, %arg5: memref<32x1xf32, #tpu.memory_space<vmem>>, %arg6: memref<49x2x256xf32, #tpu.memory_space<vmem>>, %arg7: memref<1xf32, #tpu.memory_space<smem>>, %arg8: memref<1x32x256xf32, #tpu.memory_space<vmem>>) attributes {dimension_semantics = [#tpu.dimension_semantics<parallel>], iteration_bounds = array<i64: 2>, scalar_prefetch = 0 : i64, scratch_operands = 0 : i64, tpu.core_type = #tpu.core_type<tc>, window_params = [{transform_indices = @transform_0, window_bounds = array<i64: 1, 32, 256>}, {pipeline_mode = #tpu.pipeline_mode<synchronous>, transform_indices = @transform_1, window_bounds = array<i64: 32, 2>}, {pipeline_mode = #tpu.pipeline_mode<synchronous>, transform_indices = @transform_2, window_bounds = array<i64: 1, 2>}, {pipeline_mode = #tpu.pipeline_mode<synchronous>, transform_indices = @transform_3, window_bounds = array<i64: 32, 2>}, {pipeline_mode = #tpu.pipeline_mode<synchronous>, transform_indices = @transform_4, window_bounds = array<i64: 32, 1>}, {pipeline_mode = #tpu.pipeline_mode<synchronous>, transform_indices = @transform_5, window_bounds = array<i64: 49, 2, 256>}, {transform_indices = @transform_6, window_bounds = array<i64: 1>}, {transform_indices = @transform_7, window_bounds = array<i64: 1, 32, 256>}]} {
    %c0 = arith.constant 0 : index
    %c0_0 = arith.constant 0 : index
    %c0_1 = arith.constant 0 : index
    %0 = vector.load %arg1[%c0, %c0_0, %c0_1] : memref<1x32x256xf32, #tpu.memory_space<vmem>>, vector<1x32x256xf32>
    %cst = arith.constant dense<0.000000e+00> : vector<1x32xf32>
    %1 = vector.multi_reduction <add>, %0, %cst [2] : vector<1x32x256xf32> to vector<1x32xf32>
    %2 = vector.shape_cast %1 : vector<1x32xf32> to vector<1x32x1xf32>
    %cst_2 = arith.constant 2.560000e+02 : f32
    %3 = vector.broadcast %cst_2 : f32 to vector<1x32x1xf32>
    %4 = arith.divf %2, %3 : vector<1x32x1xf32>
    %c0_3 = arith.constant 0 : index
    %c0_4 = arith.constant 0 : index
    %5 = vector.load %arg2[%c0_3, %c0_4] : memref<32x2xf32, #tpu.memory_space<vmem>>, vector<32x2xf32>
    %6 = vector.shape_cast %5 : vector<32x2xf32> to vector<1x32x2xf32>
    %7 = vector.broadcast %4 : vector<1x32x1xf32> to vector<1x32x2xf32>
    %8 = arith.mulf %6, %7 : vector<1x32x2xf32>
    %cst_5 = arith.constant dense<0.000000e+00> : vector<1x2xf32>
    %9 = vector.multi_reduction <add>, %8, %cst_5 [1] : vector<1x32x2xf32> to vector<1x2xf32>
    %10 = vector.shape_cast %9 : vector<1x2xf32> to vector<1x1x2xf32>
    %c0_6 = arith.constant 0 : index
    %c0_7 = arith.constant 0 : index
    %11 = vector.load %arg3[%c0_6, %c0_7] : memref<1x2xf32, #tpu.memory_space<vmem>>, vector<1x2xf32>
    %12 = vector.shape_cast %11 : vector<1x2xf32> to vector<1x1x2xf32>
    %13 = arith.addf %10, %12 : vector<1x1x2xf32>
    %cst_8 = arith.constant 0.000000e+00 : f32
    %14 = vector.broadcast %cst_8 : f32 to vector<1x1x2xf32>
    %15 = arith.maximumf %13, %14 : vector<1x1x2xf32>
    %c0_9 = arith.constant 0 : index
    %c0_10 = arith.constant 0 : index
    %16 = vector.load %arg4[%c0_9, %c0_10] : memref<32x2xf32, #tpu.memory_space<vmem>>, vector<32x2xf32>
    %17 = vector.shape_cast %16 : vector<32x2xf32> to vector<1x32x2xf32>
    %18 = vector.broadcast %15 : vector<1x1x2xf32> to vector<1x32x2xf32>
    %19 = arith.mulf %17, %18 : vector<1x32x2xf32>
    %cst_11 = arith.constant dense<0.000000e+00> : vector<1x32xf32>
    %20 = vector.multi_reduction <add>, %19, %cst_11 [2] : vector<1x32x2xf32> to vector<1x32xf32>
    %21 = vector.shape_cast %20 : vector<1x32xf32> to vector<1x32x1xf32>
    %c0_12 = arith.constant 0 : index
    %c0_13 = arith.constant 0 : index
    %22 = vector.load %arg5[%c0_12, %c0_13] : memref<32x1xf32, #tpu.memory_space<vmem>>, vector<32x1xf32>
    %23 = vector.shape_cast %22 : vector<32x1xf32> to vector<1x32x1xf32>
    %24 = arith.addf %21, %23 : vector<1x32x1xf32>
    %cst_14 = arith.constant 0.000000e+00 : f32
    %25 = vector.broadcast %cst_14 : f32 to vector<1x32x1xf32>
    %26 = arith.maximumf %24, %25 : vector<1x32x1xf32>
    %27 = arith.addf %26, %26 : vector<1x32x1xf32>
    %28 = arith.negf %27 : vector<1x32x1xf32>
    %29 = math.exp %28 : vector<1x32x1xf32>
    %cst_15 = arith.constant 1.000000e+00 : f32
    %30 = vector.broadcast %cst_15 : f32 to vector<1x32x1xf32>
    %31 = arith.addf %30, %29 : vector<1x32x1xf32>
    %32 = arith.divf %30, %31 : vector<1x32x1xf32>
    %33 = vector.broadcast %32 : vector<1x32x1xf32> to vector<1x32x256xf32>
    %34 = arith.mulf %0, %33 : vector<1x32x256xf32>
    %cst_16 = arith.constant dense<0.000000e+00> : vector<1x256xf32>
    %35 = vector.multi_reduction <add>, %34, %cst_16 [1] : vector<1x32x256xf32> to vector<1x256xf32>
    %36 = vector.shape_cast %35 : vector<1x256xf32> to vector<1x1x256xf32>
    %cst_17 = arith.constant 3.200000e+01 : f32
    %37 = vector.broadcast %cst_17 : f32 to vector<1x1x256xf32>
    %38 = arith.divf %36, %37 : vector<1x1x256xf32>
    %cst_18 = arith.constant dense<0xFF800000> : vector<1x256xf32>
    %39 = vector.multi_reduction <maximumf>, %34, %cst_18 [1] : vector<1x32x256xf32> to vector<1x256xf32>
    %40 = vector.shape_cast %39 : vector<1x256xf32> to vector<1x1x256xf32>
    %41 = tpu.concatenate %38, %40 in 1 : vector<1x1x256xf32>, vector<1x1x256xf32> -> vector<1x2x256xf32>
    %cst_19 = arith.constant 0.000000e+00 : f32
    %42 = vector.broadcast %cst_19 : f32 to vector<1x2x256xf32>
    %cst_20 = arith.constant 0.000000e+00 : f32
    %43 = vector.broadcast %cst_20 : f32 to vector<1x2x256xf32>
    %cst_21 = arith.constant 0.000000e+00 : f32
    %44 = vector.broadcast %cst_21 : f32 to vector<1x2x256xf32>
    %cst_22 = arith.constant 0.000000e+00 : f32
    %45 = vector.broadcast %cst_22 : f32 to vector<1x2x256xf32>
    %c51_i32 = arith.constant 51 : i32
    %46 = tpu.dynamic_rotate %41 by %c51_i32 dim 2 : vector<1x2x256xf32>, i32 -> vector<1x2x256xf32>
    %c0_23 = arith.constant 0 : index
    %c0_24 = arith.constant 0 : index
    %c0_25 = arith.constant 0 : index
    %47 = vector.load %arg6[%c0_23, %c0_24, %c0_25] : memref<49x2x256xf32, #tpu.memory_space<vmem>>, vector<1x2x256xf32>
    %48 = vector.shape_cast %47 : vector<1x2x256xf32> to vector<2x256xf32>
    %49 = vector.shape_cast %48 : vector<2x256xf32> to vector<1x2x256xf32>
    %50 = arith.mulf %49, %46 : vector<1x2x256xf32>
    %51 = arith.addf %42, %50 : vector<1x2x256xf32>
    %c50_i32 = arith.constant 50 : i32
    %52 = tpu.dynamic_rotate %41 by %c50_i32 dim 2 : vector<1x2x256xf32>, i32 -> vector<1x2x256xf32>
    %c1 = arith.constant 1 : index
    %c0_26 = arith.constant 0 : index
    %c0_27 = arith.constant 0 : index
    %53 = vector.load %arg6[%c1, %c0_26, %c0_27] : memref<49x2x256xf32, #tpu.memory_space<vmem>>, vector<1x2x256xf32>
    %54 = vector.shape_cast %53 : vector<1x2x256xf32> to vector<2x256xf32>
    %55 = vector.shape_cast %54 : vector<2x256xf32> to vector<1x2x256xf32>
    %56 = arith.mulf %55, %52 : vector<1x2x256xf32>
    %57 = arith.addf %43, %56 : vector<1x2x256xf32>
    %c49_i32 = arith.constant 49 : i32
    %58 = tpu.dynamic_rotate %41 by %c49_i32 dim 2 : vector<1x2x256xf32>, i32 -> vector<1x2x256xf32>
    %c2 = arith.constant 2 : index
    %c0_28 = arith.constant 0 : index
    %c0_29 = arith.constant 0 : index
    %59 = vector.load %arg6[%c2, %c0_28, %c0_29] : memref<49x2x256xf32, #tpu.memory_space<vmem>>, vector<1x2x256xf32>
    %60 = vector.shape_cast %59 : vector<1x2x256xf32> to vector<2x256xf32>
    %61 = vector.shape_cast %60 : vector<2x256xf32> to vector<1x2x256xf32>
    %62 = arith.mulf %61, %58 : vector<1x2x256xf32>
    %63 = arith.addf %44, %62 : vector<1x2x256xf32>
    %c48_i32 = arith.constant 48 : i32
    %64 = tpu.dynamic_rotate %41 by %c48_i32 dim 2 : vector<1x2x256xf32>, i32 -> vector<1x2x256xf32>
    %c3 = arith.constant 3 : index
    %c0_30 = arith.constant 0 : index
    %c0_31 = arith.constant 0 : index
    %65 = vector.load %arg6[%c3, %c0_30, %c0_31] : memref<49x2x256xf32, #tpu.memory_space<vmem>>, vector<1x2x256xf32>
    %66 = vector.shape_cast %65 : vector<1x2x256xf32> to vector<2x256xf32>
    %67 = vector.shape_cast %66 : vector<2x256xf32> to vector<1x2x256xf32>
    %68 = arith.mulf %67, %64 : vector<1x2x256xf32>
    %69 = arith.addf %45, %68 : vector<1x2x256xf32>
    %c47_i32 = arith.constant 47 : i32
    %70 = tpu.dynamic_rotate %41 by %c47_i32 dim 2 : vector<1x2x256xf32>, i32 -> vector<1x2x256xf32>
    %c4 = arith.constant 4 : index
    %c0_32 = arith.constant 0 : index
    %c0_33 = arith.constant 0 : index
    %71 = vector.load %arg6[%c4, %c0_32, %c0_33] : memref<49x2x256xf32, #tpu.memory_space<vmem>>, vector<1x2x256xf32>
    %72 = vector.shape_cast %71 : vector<1x2x256xf32> to vector<2x256xf32>
    %73 = vector.shape_cast %72 : vector<2x256xf32> to vector<1x2x256xf32>
    %74 = arith.mulf %73, %70 : vector<1x2x256xf32>
    %75 = arith.addf %51, %74 : vector<1x2x256xf32>
    %c46_i32 = arith.constant 46 : i32
    %76 = tpu.dynamic_rotate %41 by %c46_i32 dim 2 : vector<1x2x256xf32>, i32 -> vector<1x2x256xf32>
    %c5 = arith.constant 5 : index
    %c0_34 = arith.constant 0 : index
    %c0_35 = arith.constant 0 : index
    %77 = vector.load %arg6[%c5, %c0_34, %c0_35] : memref<49x2x256xf32, #tpu.memory_space<vmem>>, vector<1x2x256xf32>
    %78 = vector.shape_cast %77 : vector<1x2x256xf32> to vector<2x256xf32>
    %79 = vector.shape_cast %78 : vector<2x256xf32> to vector<1x2x256xf32>
    %80 = arith.mulf %79, %76 : vector<1x2x256xf32>
    %81 = arith.addf %57, %80 : vector<1x2x256xf32>
    %c45_i32 = arith.constant 45 : i32
    %82 = tpu.dynamic_rotate %41 by %c45_i32 dim 2 : vector<1x2x256xf32>, i32 -> vector<1x2x256xf32>
    %c6 = arith.constant 6 : index
    %c0_36 = arith.constant 0 : index
    %c0_37 = arith.constant 0 : index
    %83 = vector.load %arg6[%c6, %c0_36, %c0_37] : memref<49x2x256xf32, #tpu.memory_space<vmem>>, vector<1x2x256xf32>
    %84 = vector.shape_cast %83 : vector<1x2x256xf32> to vector<2x256xf32>
    %85 = vector.shape_cast %84 : vector<2x256xf32> to vector<1x2x256xf32>
    %86 = arith.mulf %85, %82 : vector<1x2x256xf32>
    %87 = arith.addf %63, %86 : vector<1x2x256xf32>
    %c35_i32 = arith.constant 35 : i32
    %88 = tpu.dynamic_rotate %41 by %c35_i32 dim 2 : vector<1x2x256xf32>, i32 -> vector<1x2x256xf32>
    %c7 = arith.constant 7 : index
    %c0_38 = arith.constant 0 : index
    %c0_39 = arith.constant 0 : index
    %89 = vector.load %arg6[%c7, %c0_38, %c0_39] : memref<49x2x256xf32, #tpu.memory_space<vmem>>, vector<1x2x256xf32>
    %90 = vector.shape_cast %89 : vector<1x2x256xf32> to vector<2x256xf32>
    %91 = vector.shape_cast %90 : vector<2x256xf32> to vector<1x2x256xf32>
    %92 = arith.mulf %91, %88 : vector<1x2x256xf32>
    %93 = arith.addf %69, %92 : vector<1x2x256xf32>
    %c34_i32 = arith.constant 34 : i32
    %94 = tpu.dynamic_rotate %41 by %c34_i32 dim 2 : vector<1x2x256xf32>, i32 -> vector<1x2x256xf32>
    %c8 = arith.constant 8 : index
    %c0_40 = arith.constant 0 : index
    %c0_41 = arith.constant 0 : index
    %95 = vector.load %arg6[%c8, %c0_40, %c0_41] : memref<49x2x256xf32, #tpu.memory_space<vmem>>, vector<1x2x256xf32>
    %96 = vector.shape_cast %95 : vector<1x2x256xf32> to vector<2x256xf32>
    %97 = vector.shape_cast %96 : vector<2x256xf32> to vector<1x2x256xf32>
    %98 = arith.mulf %97, %94 : vector<1x2x256xf32>
    %99 = arith.addf %75, %98 : vector<1x2x256xf32>
    %c33_i32 = arith.constant 33 : i32
    %100 = tpu.dynamic_rotate %41 by %c33_i32 dim 2 : vector<1x2x256xf32>, i32 -> vector<1x2x256xf32>
    %c9 = arith.constant 9 : index
    %c0_42 = arith.constant 0 : index
    %c0_43 = arith.constant 0 : index
    %101 = vector.load %arg6[%c9, %c0_42, %c0_43] : memref<49x2x256xf32, #tpu.memory_space<vmem>>, vector<1x2x256xf32>
    %102 = vector.shape_cast %101 : vector<1x2x256xf32> to vector<2x256xf32>
    %103 = vector.shape_cast %102 : vector<2x256xf32> to vector<1x2x256xf32>
    %104 = arith.mulf %103, %100 : vector<1x2x256xf32>
    %105 = arith.addf %81, %104 : vector<1x2x256xf32>
    %c32_i32 = arith.constant 32 : i32
    %106 = tpu.dynamic_rotate %41 by %c32_i32 dim 2 : vector<1x2x256xf32>, i32 -> vector<1x2x256xf32>
    %c10 = arith.constant 10 : index
    %c0_44 = arith.constant 0 : index
    %c0_45 = arith.constant 0 : index
    %107 = vector.load %arg6[%c10, %c0_44, %c0_45] : memref<49x2x256xf32, #tpu.memory_space<vmem>>, vector<1x2x256xf32>
    %108 = vector.shape_cast %107 : vector<1x2x256xf32> to vector<2x256xf32>
    %109 = vector.shape_cast %108 : vector<2x256xf32> to vector<1x2x256xf32>
    %110 = arith.mulf %109, %106 : vector<1x2x256xf32>
    %111 = arith.addf %87, %110 : vector<1x2x256xf32>
    %c31_i32 = arith.constant 31 : i32
    %112 = tpu.dynamic_rotate %41 by %c31_i32 dim 2 : vector<1x2x256xf32>, i32 -> vector<1x2x256xf32>
    %c11 = arith.constant 11 : index
    %c0_46 = arith.constant 0 : index
    %c0_47 = arith.constant 0 : index
    %113 = vector.load %arg6[%c11, %c0_46, %c0_47] : memref<49x2x256xf32, #tpu.memory_space<vmem>>, vector<1x2x256xf32>
    %114 = vector.shape_cast %113 : vector<1x2x256xf32> to vector<2x256xf32>
    %115 = vector.shape_cast %114 : vector<2x256xf32> to vector<1x2x256xf32>
    %116 = arith.mulf %115, %112 : vector<1x2x256xf32>
    %117 = arith.addf %93, %116 : vector<1x2x256xf32>
    %c30_i32 = arith.constant 30 : i32
    %118 = tpu.dynamic_rotate %41 by %c30_i32 dim 2 : vector<1x2x256xf32>, i32 -> vector<1x2x256xf32>
    %c12 = arith.constant 12 : index
    %c0_48 = arith.constant 0 : index
    %c0_49 = arith.constant 0 : index
    %119 = vector.load %arg6[%c12, %c0_48, %c0_49] : memref<49x2x256xf32, #tpu.memory_space<vmem>>, vector<1x2x256xf32>
    %120 = vector.shape_cast %119 : vector<1x2x256xf32> to vector<2x256xf32>
    %121 = vector.shape_cast %120 : vector<2x256xf32> to vector<1x2x256xf32>
    %122 = arith.mulf %121, %118 : vector<1x2x256xf32>
    %123 = arith.addf %99, %122 : vector<1x2x256xf32>
    %c29_i32 = arith.constant 29 : i32
    %124 = tpu.dynamic_rotate %41 by %c29_i32 dim 2 : vector<1x2x256xf32>, i32 -> vector<1x2x256xf32>
    %c13 = arith.constant 13 : index
    %c0_50 = arith.constant 0 : index
    %c0_51 = arith.constant 0 : index
    %125 = vector.load %arg6[%c13, %c0_50, %c0_51] : memref<49x2x256xf32, #tpu.memory_space<vmem>>, vector<1x2x256xf32>
    %126 = vector.shape_cast %125 : vector<1x2x256xf32> to vector<2x256xf32>
    %127 = vector.shape_cast %126 : vector<2x256xf32> to vector<1x2x256xf32>
    %128 = arith.mulf %127, %124 : vector<1x2x256xf32>
    %129 = arith.addf %105, %128 : vector<1x2x256xf32>
    %c19_i32 = arith.constant 19 : i32
    %130 = tpu.dynamic_rotate %41 by %c19_i32 dim 2 : vector<1x2x256xf32>, i32 -> vector<1x2x256xf32>
    %c14 = arith.constant 14 : index
    %c0_52 = arith.constant 0 : index
    %c0_53 = arith.constant 0 : index
    %131 = vector.load %arg6[%c14, %c0_52, %c0_53] : memref<49x2x256xf32, #tpu.memory_space<vmem>>, vector<1x2x256xf32>
    %132 = vector.shape_cast %131 : vector<1x2x256xf32> to vector<2x256xf32>
    %133 = vector.shape_cast %132 : vector<2x256xf32> to vector<1x2x256xf32>
    %134 = arith.mulf %133, %130 : vector<1x2x256xf32>
    %135 = arith.addf %111, %134 : vector<1x2x256xf32>
    %c18_i32 = arith.constant 18 : i32
    %136 = tpu.dynamic_rotate %41 by %c18_i32 dim 2 : vector<1x2x256xf32>, i32 -> vector<1x2x256xf32>
    %c15 = arith.constant 15 : index
    %c0_54 = arith.constant 0 : index
    %c0_55 = arith.constant 0 : index
    %137 = vector.load %arg6[%c15, %c0_54, %c0_55] : memref<49x2x256xf32, #tpu.memory_space<vmem>>, vector<1x2x256xf32>
    %138 = vector.shape_cast %137 : vector<1x2x256xf32> to vector<2x256xf32>
    %139 = vector.shape_cast %138 : vector<2x256xf32> to vector<1x2x256xf32>
    %140 = arith.mulf %139, %136 : vector<1x2x256xf32>
    %141 = arith.addf %117, %140 : vector<1x2x256xf32>
    %c17_i32 = arith.constant 17 : i32
    %142 = tpu.dynamic_rotate %41 by %c17_i32 dim 2 : vector<1x2x256xf32>, i32 -> vector<1x2x256xf32>
    %c16 = arith.constant 16 : index
    %c0_56 = arith.constant 0 : index
    %c0_57 = arith.constant 0 : index
    %143 = vector.load %arg6[%c16, %c0_56, %c0_57] : memref<49x2x256xf32, #tpu.memory_space<vmem>>, vector<1x2x256xf32>
    %144 = vector.shape_cast %143 : vector<1x2x256xf32> to vector<2x256xf32>
    %145 = vector.shape_cast %144 : vector<2x256xf32> to vector<1x2x256xf32>
    %146 = arith.mulf %145, %142 : vector<1x2x256xf32>
    %147 = arith.addf %123, %146 : vector<1x2x256xf32>
    %c16_i32 = arith.constant 16 : i32
    %148 = tpu.dynamic_rotate %41 by %c16_i32 dim 2 : vector<1x2x256xf32>, i32 -> vector<1x2x256xf32>
    %c17 = arith.constant 17 : index
    %c0_58 = arith.constant 0 : index
    %c0_59 = arith.constant 0 : index
    %149 = vector.load %arg6[%c17, %c0_58, %c0_59] : memref<49x2x256xf32, #tpu.memory_space<vmem>>, vector<1x2x256xf32>
    %150 = vector.shape_cast %149 : vector<1x2x256xf32> to vector<2x256xf32>
    %151 = vector.shape_cast %150 : vector<2x256xf32> to vector<1x2x256xf32>
    %152 = arith.mulf %151, %148 : vector<1x2x256xf32>
    %153 = arith.addf %129, %152 : vector<1x2x256xf32>
    %c15_i32 = arith.constant 15 : i32
    %154 = tpu.dynamic_rotate %41 by %c15_i32 dim 2 : vector<1x2x256xf32>, i32 -> vector<1x2x256xf32>
    %c18 = arith.constant 18 : index
    %c0_60 = arith.constant 0 : index
    %c0_61 = arith.constant 0 : index
    %155 = vector.load %arg6[%c18, %c0_60, %c0_61] : memref<49x2x256xf32, #tpu.memory_space<vmem>>, vector<1x2x256xf32>
    %156 = vector.shape_cast %155 : vector<1x2x256xf32> to vector<2x256xf32>
    %157 = vector.shape_cast %156 : vector<2x256xf32> to vector<1x2x256xf32>
    %158 = arith.mulf %157, %154 : vector<1x2x256xf32>
    %159 = arith.addf %135, %158 : vector<1x2x256xf32>
    %c14_i32 = arith.constant 14 : i32
    %160 = tpu.dynamic_rotate %41 by %c14_i32 dim 2 : vector<1x2x256xf32>, i32 -> vector<1x2x256xf32>
    %c19 = arith.constant 19 : index
    %c0_62 = arith.constant 0 : index
    %c0_63 = arith.constant 0 : index
    %161 = vector.load %arg6[%c19, %c0_62, %c0_63] : memref<49x2x256xf32, #tpu.memory_space<vmem>>, vector<1x2x256xf32>
    %162 = vector.shape_cast %161 : vector<1x2x256xf32> to vector<2x256xf32>
    %163 = vector.shape_cast %162 : vector<2x256xf32> to vector<1x2x256xf32>
    %164 = arith.mulf %163, %160 : vector<1x2x256xf32>
    %165 = arith.addf %141, %164 : vector<1x2x256xf32>
    %c13_i32 = arith.constant 13 : i32
    %166 = tpu.dynamic_rotate %41 by %c13_i32 dim 2 : vector<1x2x256xf32>, i32 -> vector<1x2x256xf32>
    %c20 = arith.constant 20 : index
    %c0_64 = arith.constant 0 : index
    %c0_65 = arith.constant 0 : index
    %167 = vector.load %arg6[%c20, %c0_64, %c0_65] : memref<49x2x256xf32, #tpu.memory_space<vmem>>, vector<1x2x256xf32>
    %168 = vector.shape_cast %167 : vector<1x2x256xf32> to vector<2x256xf32>
    %169 = vector.shape_cast %168 : vector<2x256xf32> to vector<1x2x256xf32>
    %170 = arith.mulf %169, %166 : vector<1x2x256xf32>
    %171 = arith.addf %147, %170 : vector<1x2x256xf32>
    %c3_i32 = arith.constant 3 : i32
    %172 = tpu.dynamic_rotate %41 by %c3_i32 dim 2 : vector<1x2x256xf32>, i32 -> vector<1x2x256xf32>
    %c21 = arith.constant 21 : index
    %c0_66 = arith.constant 0 : index
    %c0_67 = arith.constant 0 : index
    %173 = vector.load %arg6[%c21, %c0_66, %c0_67] : memref<49x2x256xf32, #tpu.memory_space<vmem>>, vector<1x2x256xf32>
    %174 = vector.shape_cast %173 : vector<1x2x256xf32> to vector<2x256xf32>
    %175 = vector.shape_cast %174 : vector<2x256xf32> to vector<1x2x256xf32>
    %176 = arith.mulf %175, %172 : vector<1x2x256xf32>
    %177 = arith.addf %153, %176 : vector<1x2x256xf32>
    %c2_i32 = arith.constant 2 : i32
    %178 = tpu.dynamic_rotate %41 by %c2_i32 dim 2 : vector<1x2x256xf32>, i32 -> vector<1x2x256xf32>
    %c22 = arith.constant 22 : index
    %c0_68 = arith.constant 0 : index
    %c0_69 = arith.constant 0 : index
    %179 = vector.load %arg6[%c22, %c0_68, %c0_69] : memref<49x2x256xf32, #tpu.memory_space<vmem>>, vector<1x2x256xf32>
    %180 = vector.shape_cast %179 : vector<1x2x256xf32> to vector<2x256xf32>
    %181 = vector.shape_cast %180 : vector<2x256xf32> to vector<1x2x256xf32>
    %182 = arith.mulf %181, %178 : vector<1x2x256xf32>
    %183 = arith.addf %159, %182 : vector<1x2x256xf32>
    %c1_i32 = arith.constant 1 : i32
    %184 = tpu.dynamic_rotate %41 by %c1_i32 dim 2 : vector<1x2x256xf32>, i32 -> vector<1x2x256xf32>
    %c23 = arith.constant 23 : index
    %c0_70 = arith.constant 0 : index
    %c0_71 = arith.constant 0 : index
    %185 = vector.load %arg6[%c23, %c0_70, %c0_71] : memref<49x2x256xf32, #tpu.memory_space<vmem>>, vector<1x2x256xf32>
    %186 = vector.shape_cast %185 : vector<1x2x256xf32> to vector<2x256xf32>
    %187 = vector.shape_cast %186 : vector<2x256xf32> to vector<1x2x256xf32>
    %188 = arith.mulf %187, %184 : vector<1x2x256xf32>
    %189 = arith.addf %165, %188 : vector<1x2x256xf32>
    %c24 = arith.constant 24 : index
    %c0_72 = arith.constant 0 : index
    %c0_73 = arith.constant 0 : index
    %190 = vector.load %arg6[%c24, %c0_72, %c0_73] : memref<49x2x256xf32, #tpu.memory_space<vmem>>, vector<1x2x256xf32>
    %191 = vector.shape_cast %190 : vector<1x2x256xf32> to vector<2x256xf32>
    %192 = vector.shape_cast %191 : vector<2x256xf32> to vector<1x2x256xf32>
    %193 = arith.mulf %192, %41 : vector<1x2x256xf32>
    %194 = arith.addf %171, %193 : vector<1x2x256xf32>
    %c255_i32 = arith.constant 255 : i32
    %195 = tpu.dynamic_rotate %41 by %c255_i32 dim 2 : vector<1x2x256xf32>, i32 -> vector<1x2x256xf32>
    %c25 = arith.constant 25 : index
    %c0_74 = arith.constant 0 : index
    %c0_75 = arith.constant 0 : index
    %196 = vector.load %arg6[%c25, %c0_74, %c0_75] : memref<49x2x256xf32, #tpu.memory_space<vmem>>, vector<1x2x256xf32>
    %197 = vector.shape_cast %196 : vector<1x2x256xf32> to vector<2x256xf32>
    %198 = vector.shape_cast %197 : vector<2x256xf32> to vector<1x2x256xf32>
    %199 = arith.mulf %198, %195 : vector<1x2x256xf32>
    %200 = arith.addf %177, %199 : vector<1x2x256xf32>
    %c254_i32 = arith.constant 254 : i32
    %201 = tpu.dynamic_rotate %41 by %c254_i32 dim 2 : vector<1x2x256xf32>, i32 -> vector<1x2x256xf32>
    %c26 = arith.constant 26 : index
    %c0_76 = arith.constant 0 : index
    %c0_77 = arith.constant 0 : index
    %202 = vector.load %arg6[%c26, %c0_76, %c0_77] : memref<49x2x256xf32, #tpu.memory_space<vmem>>, vector<1x2x256xf32>
    %203 = vector.shape_cast %202 : vector<1x2x256xf32> to vector<2x256xf32>
    %204 = vector.shape_cast %203 : vector<2x256xf32> to vector<1x2x256xf32>
    %205 = arith.mulf %204, %201 : vector<1x2x256xf32>
    %206 = arith.addf %183, %205 : vector<1x2x256xf32>
    %c253_i32 = arith.constant 253 : i32
    %207 = tpu.dynamic_rotate %41 by %c253_i32 dim 2 : vector<1x2x256xf32>, i32 -> vector<1x2x256xf32>
    %c27 = arith.constant 27 : index
    %c0_78 = arith.constant 0 : index
    %c0_79 = arith.constant 0 : index
    %208 = vector.load %arg6[%c27, %c0_78, %c0_79] : memref<49x2x256xf32, #tpu.memory_space<vmem>>, vector<1x2x256xf32>
    %209 = vector.shape_cast %208 : vector<1x2x256xf32> to vector<2x256xf32>
    %210 = vector.shape_cast %209 : vector<2x256xf32> to vector<1x2x256xf32>
    %211 = arith.mulf %210, %207 : vector<1x2x256xf32>
    %212 = arith.addf %189, %211 : vector<1x2x256xf32>
    %c243_i32 = arith.constant 243 : i32
    %213 = tpu.dynamic_rotate %41 by %c243_i32 dim 2 : vector<1x2x256xf32>, i32 -> vector<1x2x256xf32>
    %c28 = arith.constant 28 : index
    %c0_80 = arith.constant 0 : index
    %c0_81 = arith.constant 0 : index
    %214 = vector.load %arg6[%c28, %c0_80, %c0_81] : memref<49x2x256xf32, #tpu.memory_space<vmem>>, vector<1x2x256xf32>
    %215 = vector.shape_cast %214 : vector<1x2x256xf32> to vector<2x256xf32>
    %216 = vector.shape_cast %215 : vector<2x256xf32> to vector<1x2x256xf32>
    %217 = arith.mulf %216, %213 : vector<1x2x256xf32>
    %218 = arith.addf %194, %217 : vector<1x2x256xf32>
    %c242_i32 = arith.constant 242 : i32
    %219 = tpu.dynamic_rotate %41 by %c242_i32 dim 2 : vector<1x2x256xf32>, i32 -> vector<1x2x256xf32>
    %c29 = arith.constant 29 : index
    %c0_82 = arith.constant 0 : index
    %c0_83 = arith.constant 0 : index
    %220 = vector.load %arg6[%c29, %c0_82, %c0_83] : memref<49x2x256xf32, #tpu.memory_space<vmem>>, vector<1x2x256xf32>
    %221 = vector.shape_cast %220 : vector<1x2x256xf32> to vector<2x256xf32>
    %222 = vector.shape_cast %221 : vector<2x256xf32> to vector<1x2x256xf32>
    %223 = arith.mulf %222, %219 : vector<1x2x256xf32>
    %224 = arith.addf %200, %223 : vector<1x2x256xf32>
    %c241_i32 = arith.constant 241 : i32
    %225 = tpu.dynamic_rotate %41 by %c241_i32 dim 2 : vector<1x2x256xf32>, i32 -> vector<1x2x256xf32>
    %c30 = arith.constant 30 : index
    %c0_84 = arith.constant 0 : index
    %c0_85 = arith.constant 0 : index
    %226 = vector.load %arg6[%c30, %c0_84, %c0_85] : memref<49x2x256xf32, #tpu.memory_space<vmem>>, vector<1x2x256xf32>
    %227 = vector.shape_cast %226 : vector<1x2x256xf32> to vector<2x256xf32>
    %228 = vector.shape_cast %227 : vector<2x256xf32> to vector<1x2x256xf32>
    %229 = arith.mulf %228, %225 : vector<1x2x256xf32>
    %230 = arith.addf %206, %229 : vector<1x2x256xf32>
    %c240_i32 = arith.constant 240 : i32
    %231 = tpu.dynamic_rotate %41 by %c240_i32 dim 2 : vector<1x2x256xf32>, i32 -> vector<1x2x256xf32>
    %c31 = arith.constant 31 : index
    %c0_86 = arith.constant 0 : index
    %c0_87 = arith.constant 0 : index
    %232 = vector.load %arg6[%c31, %c0_86, %c0_87] : memref<49x2x256xf32, #tpu.memory_space<vmem>>, vector<1x2x256xf32>
    %233 = vector.shape_cast %232 : vector<1x2x256xf32> to vector<2x256xf32>
    %234 = vector.shape_cast %233 : vector<2x256xf32> to vector<1x2x256xf32>
    %235 = arith.mulf %234, %231 : vector<1x2x256xf32>
    %236 = arith.addf %212, %235 : vector<1x2x256xf32>
    %c239_i32 = arith.constant 239 : i32
    %237 = tpu.dynamic_rotate %41 by %c239_i32 dim 2 : vector<1x2x256xf32>, i32 -> vector<1x2x256xf32>
    %c32 = arith.constant 32 : index
    %c0_88 = arith.constant 0 : index
    %c0_89 = arith.constant 0 : index
    %238 = vector.load %arg6[%c32, %c0_88, %c0_89] : memref<49x2x256xf32, #tpu.memory_space<vmem>>, vector<1x2x256xf32>
    %239 = vector.shape_cast %238 : vector<1x2x256xf32> to vector<2x256xf32>
    %240 = vector.shape_cast %239 : vector<2x256xf32> to vector<1x2x256xf32>
    %241 = arith.mulf %240, %237 : vector<1x2x256xf32>
    %242 = arith.addf %218, %241 : vector<1x2x256xf32>
    %c238_i32 = arith.constant 238 : i32
    %243 = tpu.dynamic_rotate %41 by %c238_i32 dim 2 : vector<1x2x256xf32>, i32 -> vector<1x2x256xf32>
    %c33 = arith.constant 33 : index
    %c0_90 = arith.constant 0 : index
    %c0_91 = arith.constant 0 : index
    %244 = vector.load %arg6[%c33, %c0_90, %c0_91] : memref<49x2x256xf32, #tpu.memory_space<vmem>>, vector<1x2x256xf32>
    %245 = vector.shape_cast %244 : vector<1x2x256xf32> to vector<2x256xf32>
    %246 = vector.shape_cast %245 : vector<2x256xf32> to vector<1x2x256xf32>
    %247 = arith.mulf %246, %243 : vector<1x2x256xf32>
    %248 = arith.addf %224, %247 : vector<1x2x256xf32>
    %c237_i32 = arith.constant 237 : i32
    %249 = tpu.dynamic_rotate %41 by %c237_i32 dim 2 : vector<1x2x256xf32>, i32 -> vector<1x2x256xf32>
    %c34 = arith.constant 34 : index
    %c0_92 = arith.constant 0 : index
    %c0_93 = arith.constant 0 : index
    %250 = vector.load %arg6[%c34, %c0_92, %c0_93] : memref<49x2x256xf32, #tpu.memory_space<vmem>>, vector<1x2x256xf32>
    %251 = vector.shape_cast %250 : vector<1x2x256xf32> to vector<2x256xf32>
    %252 = vector.shape_cast %251 : vector<2x256xf32> to vector<1x2x256xf32>
    %253 = arith.mulf %252, %249 : vector<1x2x256xf32>
    %254 = arith.addf %230, %253 : vector<1x2x256xf32>
    %c227_i32 = arith.constant 227 : i32
    %255 = tpu.dynamic_rotate %41 by %c227_i32 dim 2 : vector<1x2x256xf32>, i32 -> vector<1x2x256xf32>
    %c35 = arith.constant 35 : index
    %c0_94 = arith.constant 0 : index
    %c0_95 = arith.constant 0 : index
    %256 = vector.load %arg6[%c35, %c0_94, %c0_95] : memref<49x2x256xf32, #tpu.memory_space<vmem>>, vector<1x2x256xf32>
    %257 = vector.shape_cast %256 : vector<1x2x256xf32> to vector<2x256xf32>
    %258 = vector.shape_cast %257 : vector<2x256xf32> to vector<1x2x256xf32>
    %259 = arith.mulf %258, %255 : vector<1x2x256xf32>
    %260 = arith.addf %236, %259 : vector<1x2x256xf32>
    %c226_i32 = arith.constant 226 : i32
    %261 = tpu.dynamic_rotate %41 by %c226_i32 dim 2 : vector<1x2x256xf32>, i32 -> vector<1x2x256xf32>
    %c36 = arith.constant 36 : index
    %c0_96 = arith.constant 0 : index
    %c0_97 = arith.constant 0 : index
    %262 = vector.load %arg6[%c36, %c0_96, %c0_97] : memref<49x2x256xf32, #tpu.memory_space<vmem>>, vector<1x2x256xf32>
    %263 = vector.shape_cast %262 : vector<1x2x256xf32> to vector<2x256xf32>
    %264 = vector.shape_cast %263 : vector<2x256xf32> to vector<1x2x256xf32>
    %265 = arith.mulf %264, %261 : vector<1x2x256xf32>
    %266 = arith.addf %242, %265 : vector<1x2x256xf32>
    %c225_i32 = arith.constant 225 : i32
    %267 = tpu.dynamic_rotate %41 by %c225_i32 dim 2 : vector<1x2x256xf32>, i32 -> vector<1x2x256xf32>
    %c37 = arith.constant 37 : index
    %c0_98 = arith.constant 0 : index
    %c0_99 = arith.constant 0 : index
    %268 = vector.load %arg6[%c37, %c0_98, %c0_99] : memref<49x2x256xf32, #tpu.memory_space<vmem>>, vector<1x2x256xf32>
    %269 = vector.shape_cast %268 : vector<1x2x256xf32> to vector<2x256xf32>
    %270 = vector.shape_cast %269 : vector<2x256xf32> to vector<1x2x256xf32>
    %271 = arith.mulf %270, %267 : vector<1x2x256xf32>
    %272 = arith.addf %248, %271 : vector<1x2x256xf32>
    %c224_i32 = arith.constant 224 : i32
    %273 = tpu.dynamic_rotate %41 by %c224_i32 dim 2 : vector<1x2x256xf32>, i32 -> vector<1x2x256xf32>
    %c38 = arith.constant 38 : index
    %c0_100 = arith.constant 0 : index
    %c0_101 = arith.constant 0 : index
    %274 = vector.load %arg6[%c38, %c0_100, %c0_101] : memref<49x2x256xf32, #tpu.memory_space<vmem>>, vector<1x2x256xf32>
    %275 = vector.shape_cast %274 : vector<1x2x256xf32> to vector<2x256xf32>
    %276 = vector.shape_cast %275 : vector<2x256xf32> to vector<1x2x256xf32>
    %277 = arith.mulf %276, %273 : vector<1x2x256xf32>
    %278 = arith.addf %254, %277 : vector<1x2x256xf32>
    %c223_i32 = arith.constant 223 : i32
    %279 = tpu.dynamic_rotate %41 by %c223_i32 dim 2 : vector<1x2x256xf32>, i32 -> vector<1x2x256xf32>
    %c39 = arith.constant 39 : index
    %c0_102 = arith.constant 0 : index
    %c0_103 = arith.constant 0 : index
    %280 = vector.load %arg6[%c39, %c0_102, %c0_103] : memref<49x2x256xf32, #tpu.memory_space<vmem>>, vector<1x2x256xf32>
    %281 = vector.shape_cast %280 : vector<1x2x256xf32> to vector<2x256xf32>
    %282 = vector.shape_cast %281 : vector<2x256xf32> to vector<1x2x256xf32>
    %283 = arith.mulf %282, %279 : vector<1x2x256xf32>
    %284 = arith.addf %260, %283 : vector<1x2x256xf32>
    %c222_i32 = arith.constant 222 : i32
    %285 = tpu.dynamic_rotate %41 by %c222_i32 dim 2 : vector<1x2x256xf32>, i32 -> vector<1x2x256xf32>
    %c40 = arith.constant 40 : index
    %c0_104 = arith.constant 0 : index
    %c0_105 = arith.constant 0 : index
    %286 = vector.load %arg6[%c40, %c0_104, %c0_105] : memref<49x2x256xf32, #tpu.memory_space<vmem>>, vector<1x2x256xf32>
    %287 = vector.shape_cast %286 : vector<1x2x256xf32> to vector<2x256xf32>
    %288 = vector.shape_cast %287 : vector<2x256xf32> to vector<1x2x256xf32>
    %289 = arith.mulf %288, %285 : vector<1x2x256xf32>
    %290 = arith.addf %266, %289 : vector<1x2x256xf32>
    %c221_i32 = arith.constant 221 : i32
    %291 = tpu.dynamic_rotate %41 by %c221_i32 dim 2 : vector<1x2x256xf32>, i32 -> vector<1x2x256xf32>
    %c41 = arith.constant 41 : index
    %c0_106 = arith.constant 0 : index
    %c0_107 = arith.constant 0 : index
    %292 = vector.load %arg6[%c41, %c0_106, %c0_107] : memref<49x2x256xf32, #tpu.memory_space<vmem>>, vector<1x2x256xf32>
    %293 = vector.shape_cast %292 : vector<1x2x256xf32> to vector<2x256xf32>
    %294 = vector.shape_cast %293 : vector<2x256xf32> to vector<1x2x256xf32>
    %295 = arith.mulf %294, %291 : vector<1x2x256xf32>
    %296 = arith.addf %272, %295 : vector<1x2x256xf32>
    %c211_i32 = arith.constant 211 : i32
    %297 = tpu.dynamic_rotate %41 by %c211_i32 dim 2 : vector<1x2x256xf32>, i32 -> vector<1x2x256xf32>
    %c42 = arith.constant 42 : index
    %c0_108 = arith.constant 0 : index
    %c0_109 = arith.constant 0 : index
    %298 = vector.load %arg6[%c42, %c0_108, %c0_109] : memref<49x2x256xf32, #tpu.memory_space<vmem>>, vector<1x2x256xf32>
    %299 = vector.shape_cast %298 : vector<1x2x256xf32> to vector<2x256xf32>
    %300 = vector.shape_cast %299 : vector<2x256xf32> to vector<1x2x256xf32>
    %301 = arith.mulf %300, %297 : vector<1x2x256xf32>
    %302 = arith.addf %278, %301 : vector<1x2x256xf32>
    %c210_i32 = arith.constant 210 : i32
    %303 = tpu.dynamic_rotate %41 by %c210_i32 dim 2 : vector<1x2x256xf32>, i32 -> vector<1x2x256xf32>
    %c43 = arith.constant 43 : index
    %c0_110 = arith.constant 0 : index
    %c0_111 = arith.constant 0 : index
    %304 = vector.load %arg6[%c43, %c0_110, %c0_111] : memref<49x2x256xf32, #tpu.memory_space<vmem>>, vector<1x2x256xf32>
    %305 = vector.shape_cast %304 : vector<1x2x256xf32> to vector<2x256xf32>
    %306 = vector.shape_cast %305 : vector<2x256xf32> to vector<1x2x256xf32>
    %307 = arith.mulf %306, %303 : vector<1x2x256xf32>
    %308 = arith.addf %284, %307 : vector<1x2x256xf32>
    %c209_i32 = arith.constant 209 : i32
    %309 = tpu.dynamic_rotate %41 by %c209_i32 dim 2 : vector<1x2x256xf32>, i32 -> vector<1x2x256xf32>
    %c44 = arith.constant 44 : index
    %c0_112 = arith.constant 0 : index
    %c0_113 = arith.constant 0 : index
    %310 = vector.load %arg6[%c44, %c0_112, %c0_113] : memref<49x2x256xf32, #tpu.memory_space<vmem>>, vector<1x2x256xf32>
    %311 = vector.shape_cast %310 : vector<1x2x256xf32> to vector<2x256xf32>
    %312 = vector.shape_cast %311 : vector<2x256xf32> to vector<1x2x256xf32>
    %313 = arith.mulf %312, %309 : vector<1x2x256xf32>
    %314 = arith.addf %290, %313 : vector<1x2x256xf32>
    %c208_i32 = arith.constant 208 : i32
    %315 = tpu.dynamic_rotate %41 by %c208_i32 dim 2 : vector<1x2x256xf32>, i32 -> vector<1x2x256xf32>
    %c45 = arith.constant 45 : index
    %c0_114 = arith.constant 0 : index
    %c0_115 = arith.constant 0 : index
    %316 = vector.load %arg6[%c45, %c0_114, %c0_115] : memref<49x2x256xf32, #tpu.memory_space<vmem>>, vector<1x2x256xf32>
    %317 = vector.shape_cast %316 : vector<1x2x256xf32> to vector<2x256xf32>
    %318 = vector.shape_cast %317 : vector<2x256xf32> to vector<1x2x256xf32>
    %319 = arith.mulf %318, %315 : vector<1x2x256xf32>
    %320 = arith.addf %296, %319 : vector<1x2x256xf32>
    %c207_i32 = arith.constant 207 : i32
    %321 = tpu.dynamic_rotate %41 by %c207_i32 dim 2 : vector<1x2x256xf32>, i32 -> vector<1x2x256xf32>
    %c46 = arith.constant 46 : index
    %c0_116 = arith.constant 0 : index
    %c0_117 = arith.constant 0 : index
    %322 = vector.load %arg6[%c46, %c0_116, %c0_117] : memref<49x2x256xf32, #tpu.memory_space<vmem>>, vector<1x2x256xf32>
    %323 = vector.shape_cast %322 : vector<1x2x256xf32> to vector<2x256xf32>
    %324 = vector.shape_cast %323 : vector<2x256xf32> to vector<1x2x256xf32>
    %325 = arith.mulf %324, %321 : vector<1x2x256xf32>
    %326 = arith.addf %302, %325 : vector<1x2x256xf32>
    %c206_i32 = arith.constant 206 : i32
    %327 = tpu.dynamic_rotate %41 by %c206_i32 dim 2 : vector<1x2x256xf32>, i32 -> vector<1x2x256xf32>
    %c47 = arith.constant 47 : index
    %c0_118 = arith.constant 0 : index
    %c0_119 = arith.constant 0 : index
    %328 = vector.load %arg6[%c47, %c0_118, %c0_119] : memref<49x2x256xf32, #tpu.memory_space<vmem>>, vector<1x2x256xf32>
    %329 = vector.shape_cast %328 : vector<1x2x256xf32> to vector<2x256xf32>
    %330 = vector.shape_cast %329 : vector<2x256xf32> to vector<1x2x256xf32>
    %331 = arith.mulf %330, %327 : vector<1x2x256xf32>
    %332 = arith.addf %308, %331 : vector<1x2x256xf32>
    %c205_i32 = arith.constant 205 : i32
    %333 = tpu.dynamic_rotate %41 by %c205_i32 dim 2 : vector<1x2x256xf32>, i32 -> vector<1x2x256xf32>
    %c48 = arith.constant 48 : index
    %c0_120 = arith.constant 0 : index
    %c0_121 = arith.constant 0 : index
    %334 = vector.load %arg6[%c48, %c0_120, %c0_121] : memref<49x2x256xf32, #tpu.memory_space<vmem>>, vector<1x2x256xf32>
    %335 = vector.shape_cast %334 : vector<1x2x256xf32> to vector<2x256xf32>
    %336 = vector.shape_cast %335 : vector<2x256xf32> to vector<1x2x256xf32>
    %337 = arith.mulf %336, %333 : vector<1x2x256xf32>
    %338 = arith.addf %314, %337 : vector<1x2x256xf32>
    %339 = arith.addf %338, %320 : vector<1x2x256xf32>
    %340 = arith.addf %326, %332 : vector<1x2x256xf32>
    %341 = arith.addf %339, %340 : vector<1x2x256xf32>
    %cst_122 = arith.constant dense<0.000000e+00> : vector<1x256xf32>
    %342 = vector.multi_reduction <add>, %341, %cst_122 [1] : vector<1x2x256xf32> to vector<1x256xf32>
    %343 = vector.shape_cast %342 : vector<1x256xf32> to vector<1x1x256xf32>
    %c0_123 = arith.constant 0 : index
    %344 = memref.load %arg7[%c0_123] : memref<1xf32, #tpu.memory_space<smem>>
    %345 = vector.broadcast %344 : f32 to vector<1x1x256xf32>
    %346 = arith.addf %343, %345 : vector<1x1x256xf32>
    %347 = arith.negf %346 : vector<1x1x256xf32>
    %348 = math.exp %347 : vector<1x1x256xf32>
    %cst_124 = arith.constant 1.000000e+00 : f32
    %349 = vector.broadcast %cst_124 : f32 to vector<1x1x256xf32>
    %350 = arith.addf %349, %348 : vector<1x1x256xf32>
    %351 = arith.divf %349, %350 : vector<1x1x256xf32>
    %352 = vector.broadcast %351 : vector<1x1x256xf32> to vector<1x32x256xf32>
    %353 = arith.mulf %34, %352 : vector<1x32x256xf32>
    %c0_125 = arith.constant 0 : index
    %c0_126 = arith.constant 0 : index
    %c0_127 = arith.constant 0 : index
    %354 = vector.load %arg8[%c0_125, %c0_126, %c0_127] : memref<1x32x256xf32, #tpu.memory_space<vmem>>, vector<1x32x256xf32>
    tpu.vector_store %arg8[%c0_125, %c0_126, %c0_127], %353 {strides = array<i32>} : memref<1x32x256xf32, #tpu.memory_space<vmem>>, vector<1x32x256xf32>,
    return
  }
  func.func @transform_0(%arg0: i32) -> (i32, i32, i32) {
    %c0_i32 = arith.constant 0 : i32
    %c0_i32_0 = arith.constant 0 : i32
    %c0_i32_1 = arith.constant 0 : i32
    return %arg0, %c0_i32, %c0_i32_0 : i32, i32, i32
  }
  func.func @transform_1(%arg0: i32) -> (i32, i32) {
    %c0_i32 = arith.constant 0 : i32
    %c0_i32_0 = arith.constant 0 : i32
    %c0_i32_1 = arith.constant 0 : i32
    return %c0_i32, %c0_i32_0 : i32, i32
  }
  func.func @transform_2(%arg0: i32) -> (i32, i32) {
    %c0_i32 = arith.constant 0 : i32
    %c0_i32_0 = arith.constant 0 : i32
    %c0_i32_1 = arith.constant 0 : i32
    return %c0_i32, %c0_i32_0 : i32, i32
  }
  func.func @transform_3(%arg0: i32) -> (i32, i32) {
    %c0_i32 = arith.constant 0 : i32
    %c0_i32_0 = arith.constant 0 : i32
    %c0_i32_1 = arith.constant 0 : i32
    return %c0_i32, %c0_i32_0 : i32, i32
  }
  func.func @transform_4(%arg0: i32) -> (i32, i32) {
    %c0_i32 = arith.constant 0 : i32
    %c0_i32_0 = arith.constant 0 : i32
    %c0_i32_1 = arith.constant 0 : i32
    return %c0_i32, %c0_i32_0 : i32, i32
  }
  func.func @transform_5(%arg0: i32) -> (i32, i32, i32) {
    %c0_i32 = arith.constant 0 : i32
    %c0_i32_0 = arith.constant 0 : i32
    %c0_i32_1 = arith.constant 0 : i32
    %c0_i32_2 = arith.constant 0 : i32
    return %c0_i32, %c0_i32_0, %c0_i32_1 : i32, i32, i32
  }
  func.func @transform_6(%arg0: i32) -> i32 {
    %c0_i32 = arith.constant 0 : i32
    %c0_i32_0 = arith.constant 0 : i32
    return %c0_i32 : i32
  }
  func.func @transform_7(%arg0: i32) -> (i32, i32, i32) {
    %c0_i32 = arith.constant 0 : i32
    %c0_i32_0 = arith.constant 0 : i32
    %c0_i32_1 = arith.constant 0 : i32
    return %arg0, %c0_i32, %c0_i32_0 : i32, i32, i32
  }
}

</mosaic_0001>

<llo_original>
// kernel: tpu_custom_call.1
$region0: #{tpu_custom_call.1}
  #allocation0 [shape = 'u32[]', space=smem, size = 0x4, offset = 0x4, fixed_abs, tag = 'smem constant byte address 0x4 - core index']
  #allocation1 [shape = 'u32[144,128]{1,0:T(1,128)}', space=vmem, size = 0x12000, scoped, tag = 'internal scratch']
  #allocation2 [shape = 'f32[1]{0:T(128)S(6)}', space=smem, size = 0x200, scoped, tag = 'scoped memory for tpu_custom_call.1']
  %s0 = inlined_call_operand.hbm [shape: f32[2,32,256], index: 0, kind: input, shape index: {}]
  %s1 = inlined_call_operand.vmem [shape: f32[32,2], index: 1, kind: input, shape index: {}]
  %s2 = inlined_call_operand.vmem [shape: f32[1,2], index: 2, kind: input, shape index: {}]
  %s3 = inlined_call_operand.vmem [shape: f32[32,2], index: 3, kind: input, shape index: {}]
  %s4 = inlined_call_operand.vmem [shape: f32[32,1], index: 4, kind: input, shape index: {}]
  %s5 = inlined_call_operand.hbm [shape: f32[49,2,256], index: 5, kind: input, shape index: {}]
  %s6 = inlined_call_operand.<no memory space> [shape: f32[1], index: 6, kind: input, shape index: {}]
  %s7 = inlined_call_operand.hbm [shape: f32[2,32,256], index: 7, kind: output, shape index: {}]
  %s8 = sld [smem:[#allocation0]]
  $region69: #{tpu_custom_call.1} parent=0
    _
  %s10 = ssub.s32 1, %s8
  %s11 = scalar_select 0, %s10, %s8
  %12 = sst [smem:[#allocation2]] %s6
  $region1: #{tpu_custom_call.1} parent=0
    #allocation3 [shape = 'u8[65536]{0}', space=vmem, size = 0x10000, scoped, tag = 'input window, operand 0']
    #allocation4 [shape = 's32[2]{0}', space=sflag, size = 0x8, scoped, tag = 'scoped memory for tpu_custom_call.1']
    #allocation5 [shape = 's32[2]{0}', space=sflag, size = 0x8, scoped, tag = 'scoped memory for tpu_custom_call.1']
    #allocation6 [shape = 'u8[100352]{0}', space=vmem, size = 0x18800, scoped, tag = 'input window, operand 5, single buffered']
    #allocation7 [shape = 's32[1]{0}', space=sflag, size = 0x4, scoped, tag = 'scoped memory for tpu_custom_call.1']
    #allocation8 [shape = 'u8[65536]{0}', space=vmem, size = 0x10000, scoped, tag = 'output window, operand 0']
    %13 = vsyncpa [#allocation4], 0
    %s14 = scalar_lea.sflag [#allocation4], 1
    %15 = vsyncpa %s14, 0
    %16 = vsyncpa [#allocation7], 0
    %17 = vsyncpa [#allocation5], 0
    %s18 = scalar_lea.sflag [#allocation5], 1
    %19 = vsyncpa %s18, 0
    loop: start=0, step=1, limit=4
    $region2: #{tpu_custom_call.1} parent=1 // loop_pre_header
      _
    $region3: #{tpu_custom_call.1} parent=1 // loop_header
      %s21 = sphi 0, %s25
      %p22 = scmp.ge.s32.totalorder %s21, 4
      %s31 = sphi 0, %s33
      %s34 = sphi 0, %s31
      %s35 = sphi 0, %s34
      %s51 = sphi 0, %s35
      %s55 = sphi 0, %s55
      %s57 = sphi 0, %s55
      %s58 = sphi 0, %s57
      %s72 = sphi 0, %s58
      %s76 = sphi 0, %s76
      %s78 = sphi 0, %s76
      %s79 = sphi 0, %s78
      %s93 = sphi 0, %s79
      %s97 = sphi 0, %s97
      %s99 = sphi 0, %s97
      %s100 = sphi 0, %s99
      %s114 = sphi 0, %s100
      %s118 = sphi 0, %s118
      %s120 = sphi 0, %s118
      %s121 = sphi 0, %s120
      %s135 = sphi 0, %s121
      %s139 = sphi 0, %s139
      %s141 = sphi 0, %s139
      %s142 = sphi 0, %s141
      %s156 = sphi 0, %s142
      %s160 = sphi 0, %s160
      %s162 = sphi 0, %s160
      %s163 = sphi 0, %s162
      %s177 = sphi 0, %s163
      %s183 = sphi 0, %s185
      %s186 = sphi 0, %s183
      %s187 = sphi 0, %s186
      %s203 = sphi 0, %s187
    $region4: #{tpu_custom_call.1} parent=1 // loop_header_branch
      %24 = sbr.rel (%p22) target = $region8
    $region5: #{tpu_custom_call.1} parent=1 // loop_body
      %s26 = ssub.s32 %s21, 1
      %s27 = ssub.s32 %s21, 2
      %s28 = sadd.s32 %s21, 1
      %s29 = ssub.s32 %s21, %s28
      %p30 = scmp.eq.s32.totalorder %s29, 0
      %s32 = sadd.s32 %s31, 1
      %s33 = scalar_select %p30, %s31, %s32
      %p36 = pneg %p30
      %p37 = scmp.eq.s32.totalorder %s21, 1
      %p38 = por %p36, %p37
      %p39 = scmp.ne.s32.totalorder %s31, %s34
      %p40 = scmp.eq.s32.totalorder %s21, 0
      %p41 = por %p39, %p40
      %p42 = scmp.ne.s32.totalorder %s31, %s34
      %p43 = scmp.eq.s32.totalorder %s26, 1
      %p44 = por %p42, %p43
      %p45 = scmp.ne.s32.totalorder %s34, %s35
      %p46 = scmp.eq.s32.totalorder %s26, 0
      %p47 = por %p45, %p46
      %p48 = scmp.ne.s32.totalorder %s34, %s35
      %p49 = scmp.eq.s32.totalorder %s27, 1
      %p50 = por %p48, %p49
      %p52 = scmp.ne.s32.totalorder %s35, %s51
      %p53 = scmp.eq.s32.totalorder %s27, 0
      %p54 = por %p52, %p53
      %s56 = sadd.s32 %s55, 1
      %p59 = scmp.eq.s32.totalorder %s21, 1
      %p60 = scmp.ne.s32.totalorder %s55, %s57
      %p61 = scmp.eq.s32.totalorder %s21, 0
      %p62 = por %p60, %p61
      %p63 = scmp.ne.s32.totalorder %s55, %s57
      %p64 = scmp.eq.s32.totalorder %s26, 1
      %p65 = por %p63, %p64
      %p66 = scmp.ne.s32.totalorder %s57, %s58
      %p67 = scmp.eq.s32.totalorder %s26, 0
      %p68 = por %p66, %p67
      %p69 = scmp.ne.s32.totalorder %s57, %s58
      %p70 = scmp.eq.s32.totalorder %s27, 1
      %p71 = por %p69, %p70
      %p73 = scmp.ne.s32.totalorder %s58, %s72
      %p74 = scmp.eq.s32.totalorder %s27, 0
      %p75 = por %p73, %p74
      %s77 = sadd.s32 %s76, 1
      %p80 = scmp.eq.s32.totalorder %s21, 1
      %p81 = scmp.ne.s32.totalorder %s76, %s78
      %p82 = scmp.eq.s32.totalorder %s21, 0
      %p83 = por %p81, %p82
      %p84 = scmp.ne.s32.totalorder %s76, %s78
      %p85 = scmp.eq.s32.totalorder %s26, 1
      %p86 = por %p84, %p85
      %p87 = scmp.ne.s32.totalorder %s78, %s79
      %p88 = scmp.eq.s32.totalorder %s26, 0
      %p89 = por %p87, %p88
      %p90 = scmp.ne.s32.totalorder %s78, %s79
      %p91 = scmp.eq.s32.totalorder %s27, 1
      %p92 = por %p90, %p91
      %p94 = scmp.ne.s32.totalorder %s79, %s93
      %p95 = scmp.eq.s32.totalorder %s27, 0
      %p96 = por %p94, %p95
      %s98 = sadd.s32 %s97, 1
      %p101 = scmp.eq.s32.totalorder %s21, 1
      %p102 = scmp.ne.s32.totalorder %s97, %s99
      %p103 = scmp.eq.s32.totalorder %s21, 0
      %p104 = por %p102, %p103
      %p105 = scmp.ne.s32.totalorder %s97, %s99
      %p106 = scmp.eq.s32.totalorder %s26, 1
      %p107 = por %p105, %p106
      %p108 = scmp.ne.s32.totalorder %s99, %s100
      %p109 = scmp.eq.s32.totalorder %s26, 0
      %p110 = por %p108, %p109
      %p111 = scmp.ne.s32.totalorder %s99, %s100
      %p112 = scmp.eq.s32.totalorder %s27, 1
      %p113 = por %p111, %p112
      %p115 = scmp.ne.s32.totalorder %s100, %s114
      %p116 = scmp.eq.s32.totalorder %s27, 0
      %p117 = por %p115, %p116
      %s119 = sadd.s32 %s118, 1
      %p122 = scmp.eq.s32.totalorder %s21, 1
      %p123 = scmp.ne.s32.totalorder %s118, %s120
      %p124 = scmp.eq.s32.totalorder %s21, 0
      %p125 = por %p123, %p124
      %p126 = scmp.ne.s32.totalorder %s118, %s120
      %p127 = scmp.eq.s32.totalorder %s26, 1
      %p128 = por %p126, %p127
      %p129 = scmp.ne.s32.totalorder %s120, %s121
      %p130 = scmp.eq.s32.totalorder %s26, 0
      %p131 = por %p129, %p130
      %p132 = scmp.ne.s32.totalorder %s120, %s121
      %p133 = scmp.eq.s32.totalorder %s27, 1
      %p134 = por %p132, %p133
      %p136 = scmp.ne.s32.totalorder %s121, %s135
      %p137 = scmp.eq.s32.totalorder %s27, 0
      %p138 = por %p136, %p137
      %s140 = sadd.s32 %s139, 1
      %p143 = scmp.eq.s32.totalorder %s21, 1
      %p144 = scmp.ne.s32.totalorder %s139, %s141
      %p145 = scmp.eq.s32.totalorder %s21, 0
      %p146 = por %p144, %p145
      %p147 = scmp.ne.s32.totalorder %s139, %s141
      %p148 = scmp.eq.s32.totalorder %s26, 1
      %p149 = por %p147, %p148
      %p150 = scmp.ne.s32.totalorder %s141, %s142
      %p151 = scmp.eq.s32.totalorder %s26, 0
      %p152 = por %p150, %p151
      %p153 = scmp.ne.s32.totalorder %s141, %s142
      %p154 = scmp.eq.s32.totalorder %s27, 1
      %p155 = por %p153, %p154
      %p157 = scmp.ne.s32.totalorder %s142, %s156
      %p158 = scmp.eq.s32.totalorder %s27, 0
      %p159 = por %p157, %p158
      %s161 = sadd.s32 %s160, 1
      %p164 = scmp.eq.s32.totalorder %s21, 1
      %p165 = scmp.ne.s32.totalorder %s160, %s162
      %p166 = scmp.eq.s32.totalorder %s21, 0
      %p167 = por %p165, %p166
      %p168 = scmp.ne.s32.totalorder %s160, %s162
      %p169 = scmp.eq.s32.totalorder %s26, 1
      %p170 = por %p168, %p169
      %p171 = scmp.ne.s32.totalorder %s162, %s163
      %p172 = scmp.eq.s32.totalorder %s26, 0
      %p173 = por %p171, %p172
      %p174 = scmp.ne.s32.totalorder %s162, %s163
      %p175 = scmp.eq.s32.totalorder %s27, 1
      %p176 = por %p174, %p175
      %p178 = scmp.ne.s32.totalorder %s163, %s177
      %p179 = scmp.eq.s32.totalorder %s27, 0
      %p180 = por %p178, %p179
      %s181 = ssub.s32 %s21, %s28
      %p182 = scmp.eq.s32.totalorder %s181, 0
      %s184 = sadd.s32 %s183, 1
      %s185 = scalar_select %p182, %s183, %s184
      %p188 = pneg %p182
      %p189 = scmp.eq.s32.totalorder %s21, 1
      %p190 = por %p188, %p189
      %p191 = scmp.ne.s32.totalorder %s183, %s186
      %p192 = scmp.eq.s32.totalorder %s21, 0
      %p193 = por %p191, %p192
      %p194 = scmp.ne.s32.totalorder %s183, %s186
      %p195 = scmp.eq.s32.totalorder %s26, 1
      %p196 = por %p194, %p195
      %p197 = scmp.ne.s32.totalorder %s186, %s187
      %p198 = scmp.eq.s32.totalorder %s26, 0
      %p199 = por %p197, %p198
      %p200 = scmp.ne.s32.totalorder %s186, %s187
      %p201 = scmp.eq.s32.totalorder %s27, 1
      %p202 = por %p200, %p201
      %p204 = scmp.ne.s32.totalorder %s187, %s203
      %p205 = scmp.eq.s32.totalorder %s27, 0
      %p206 = por %p204, %p205
      %p207 = scmp.le.s32.totalorder 1, %s21
      %p208 = scmp.lt.s32.totalorder %s21, 3
      %p209 = pnand %p207, %p208
      %p210 = pneg %p209
      // Predicated region
      $region9: #{tpu_custom_call.1} parent=5 // pred_check
        _
      $region10: #{tpu_custom_call.1} parent=5 // pred_check_branch
        %212 = sbr.rel (%p209) target = $region12
      $region11: #{tpu_custom_call.1} parent=5 // pred_region
        %s213 = ssub.s32 %s21, 1
        // Predicated region
        $region13: #{tpu_custom_call.1} parent=11 // pred_check
          %p214 = pneg %p68
        $region14: #{tpu_custom_call.1} parent=11 // pred_check_branch
          %216 = sbr.rel (%p214) target = $region16
        $region15: #{tpu_custom_call.1} parent=11 // pred_region
          _
        $region16: #{tpu_custom_call.1} parent=11 // pred_fallthru
          _
        // Predicated region
        $region17: #{tpu_custom_call.1} parent=11 // pred_check
          %p217 = pneg %p89
        $region18: #{tpu_custom_call.1} parent=11 // pred_check_branch
          %219 = sbr.rel (%p217) target = $region20
        $region19: #{tpu_custom_call.1} parent=11 // pred_region
          _
        $region20: #{tpu_custom_call.1} parent=11 // pred_fallthru
          _
        // Predicated region
        $region21: #{tpu_custom_call.1} parent=11 // pred_check
          %p220 = pneg %p110
        $region22: #{tpu_custom_call.1} parent=11 // pred_check_branch
          %222 = sbr.rel (%p220) target = $region24
        $region23: #{tpu_custom_call.1} parent=11 // pred_region
          _
        $region24: #{tpu_custom_call.1} parent=11 // pred_fallthru
          _
        // Predicated region
        $region25: #{tpu_custom_call.1} parent=11 // pred_check
          %p223 = pneg %p131
        $region26: #{tpu_custom_call.1} parent=11 // pred_check_branch
          %225 = sbr.rel (%p223) target = $region28
        $region27: #{tpu_custom_call.1} parent=11 // pred_region
          _
        $region28: #{tpu_custom_call.1} parent=11 // pred_fallthru
          _
        // Predicated region
        $region29: #{tpu_custom_call.1} parent=11 // pred_check
          %p226 = pneg %p152
        $region30: #{tpu_custom_call.1} parent=11 // pred_check_branch
          %228 = sbr.rel (%p226) target = $region32
        $region31: #{tpu_custom_call.1} parent=11 // pred_region
          %s230 = ssub.s32 3136, 3136
          %231 = vsyncadd [#allocation7], %s230
          %s232 = sshll.u32 [#allocation6], 4
          %s233 = int_to_ptr.vmem [resolvable:$true] %s232
          %238 = dma.hbm_to_vmem [thread:$0]  %s5, 3136, %s233, [#allocation7], 64, 64, 4
        $region32: #{tpu_custom_call.1} parent=11 // pred_fallthru
          _
        // Predicated region
        $region33: #{tpu_custom_call.1} parent=11 // pred_check
          %p239 = pneg %p173
        $region34: #{tpu_custom_call.1} parent=11 // pred_check_branch
          %241 = sbr.rel (%p239) target = $region36
        $region35: #{tpu_custom_call.1} parent=11 // pred_region
          _
        $region36: #{tpu_custom_call.1} parent=11 // pred_fallthru
          _
      $region12: #{tpu_custom_call.1} parent=5 // pred_fallthru
        _
      %p242 = scmp.lt.s32.totalorder %s21, 2
      // Predicated region
      $region37: #{tpu_custom_call.1} parent=5 // pred_check
        %p243 = pneg %p242
      $region38: #{tpu_custom_call.1} parent=5 // pred_check_branch
        %245 = sbr.rel (%p243) target = $region40
      $region39: #{tpu_custom_call.1} parent=5 // pred_region
        // Predicated region
        $region41: #{tpu_custom_call.1} parent=39 // pred_check
          %p246 = pneg %p41
        $region42: #{tpu_custom_call.1} parent=39 // pred_check_branch
          %248 = sbr.rel (%p246) target = $region44
        $region43: #{tpu_custom_call.1} parent=39 // pred_region
          %s249 = sand.u32 %s31, 1
          %s250 = scalar_lea.sflag [#allocation4], %s249
          %s251 = sand.u32 %s31, 1
          %s252 = smul.addr %s251, 64
          %s253 = scalar_lea.vmem [#allocation3], %s252
          %s255 = ssub.s32 1024, 1024
          %256 = vsyncadd %s250, %s255
          %s257 = smul.addr %s21, 8
          %s258 = smul.addr %s257, 128
          %s259 = scalar_lea.hbm %s0, %s258
          %s260 = sshll.u32 %s253, 4
          %s261 = int_to_ptr.vmem [resolvable:$true] %s260
          %266 = dma.hbm_to_vmem [thread:$0]  %s259, 1024, %s261, %s250, 256, 256, 16
        $region44: #{tpu_custom_call.1} parent=39 // pred_fallthru
          _
      $region40: #{tpu_custom_call.1} parent=5 // pred_fallthru
        _
      %p267 = scmp.le.s32.totalorder 1, %s21
      %p268 = scmp.lt.s32.totalorder %s21, 3
      %p269 = pnand %p267, %p268
      %p270 = pneg %p269
      // Predicated region
      $region45: #{tpu_custom_call.1} parent=5 // pred_check
        _
      $region46: #{tpu_custom_call.1} parent=5 // pred_check_branch
        %272 = sbr.rel (%p269) target = $region48
      $region47: #{tpu_custom_call.1} parent=5 // pred_region
        %s273 = ssub.s32 %s21, 1
        %s274 = sand.u32 %s34, 1
        %s275 = scalar_lea.sflag [#allocation4], %s274
        %s276 = sand.u32 %s34, 1
        %s277 = smul.addr %s276, 64
        %s278 = scalar_lea.vmem [#allocation3], %s277
        // Predicated region
        $region49: #{tpu_custom_call.1} parent=47 // pred_check
          %p279 = pneg %p47
        $region50: #{tpu_custom_call.1} parent=47 // pred_check_branch
          %281 = sbr.rel (%p279) target = $region52
        $region51: #{tpu_custom_call.1} parent=47 // pred_region
          %282 = dma.done %s275, 1024
        $region52: #{tpu_custom_call.1} parent=47 // pred_fallthru
          _
        // Predicated region
        $region53: #{tpu_custom_call.1} parent=47 // pred_check
          %p283 = pneg %p152
        $region54: #{tpu_custom_call.1} parent=47 // pred_check_branch
          %285 = sbr.rel (%p283) target = $region56
        $region55: #{tpu_custom_call.1} parent=47 // pred_region
          %286 = dma.done [#allocation7], 3136
        $region56: #{tpu_custom_call.1} parent=47 // pred_fallthru
          _
        %s287 = sand.u32 %s34, 1
        %s288 = scalar_lea.sflag [#allocation4], %s287
        %s289 = sand.u32 %s34, 1
        %s290 = smul.addr %s289, 64
        %s291 = scalar_lea.vmem [#allocation3], %s290
        %p292 = pneg %p47
        %p293 = pneg %p44
        %p294 = pneg %p68
        %p295 = pneg %p65
        %p296 = pneg %p89
        %p297 = pneg %p86
        %p298 = pneg %p110
        %p299 = pneg %p107
        %p300 = pneg %p131
        %p301 = pneg %p128
        %p302 = pneg %p152
        %p303 = pneg %p149
        %p304 = pneg %p173
        %p305 = pneg %p170
        %p306 = pneg %p199
        %p307 = pneg %p196
        %s308 = sand.u32 %s186, 1
        %s309 = scalar_lea.sflag [#allocation5], %s308
        %s310 = sand.u32 %s186, 1
        %s311 = smul.addr %s310, 64
        %s312 = scalar_lea.vmem [#allocation8], %s311
        %v313 = vld [vmem:[%s278] sm:$0xff]
        %v314 = vld [vmem:[%s278 + $0x8] sm:$0xff]
        %v315 = vld [vmem:[%s278 + $0x10] sm:$0xff]
        %v316 = vld [vmem:[%s278 + $0x18] sm:$0xff]
        %v317 = vld [vmem:[%s278 + $0x20] sm:$0xff]
        %v318 = vld [vmem:[%s278 + $0x28] sm:$0xff]
        %v319 = vld [vmem:[%s278 + $0x30] sm:$0xff]
        %v320 = vld [vmem:[%s278 + $0x38] sm:$0xff]
        %v321 = vadd.f32 %v313, %v314
        %322 = vadd.xlane.f32.xlu0 %v321
        %v323 = vpop.xlane.xlu0 %322
        %v324 = vadd.f32 %v315, %v316
        %325 = vadd.xlane.f32.xlu0 %v324
        %v326 = vpop.xlane.xlu0 %325
        %v327 = vadd.f32 %v317, %v318
        %328 = vadd.xlane.f32.xlu0 %v327
        %v329 = vpop.xlane.xlu0 %328
        %v330 = vadd.f32 %v319, %v320
        %331 = vadd.xlane.f32.xlu0 %v330
        %v332 = vpop.xlane.xlu0 %331
        %v333 = vrcp.pop 256.0
        %v334 = vmul.f32 %v323, %v333
        %v335 = vmul.f32 %v326, %v333
        %v336 = vmul.f32 %v329, %v333
        %v337 = vmul.f32 %v332, %v333
        %v338 = vld [vmem:[%s1] sm:$0xff]
        %v339 = vld [vmem:[%s1 + $0x8] sm:$0xff]
        %v340 = vld [vmem:[%s1 + $0x10] sm:$0xff]
        %v341 = vld [vmem:[%s1 + $0x18] sm:$0xff]
        %v342 = vmul.f32 %v338, %v334
        %v343 = vmul.f32 %v339, %v335
        %v344 = vmul.f32 %v340, %v336
        %v345 = vmul.f32 %v341, %v337
        %vm346 = vcmask 15360
        %v347 = vsel %vm346, %v342, 0.0
        %v348 = vsel %vm346, %v343, 0.0
        %v349 = vadd.f32 %v347, %v348
        %v350 = vsel %vm346, %v344, 0.0
        %v351 = vadd.f32 %v349, %v350
        %v352 = vsel %vm346, %v345, 0.0
        %v353 = vadd.f32 %v351, %v352
        %v354 = vrot.slane %v353, 4
        %v355 = vadd.f32 %v353, %v354
        %v356 = vrot.slane %v355, 2
        %v357 = vadd.f32 %v355, %v356
        %v358 = vrot.slane %v357, 1
        %v359 = vadd.f32 %v357, %v358
        %v360 = vld [vmem:[%s2] sm:$0x1]
        %v361 = vadd.f32 %v359, %v360
        %v362 = vmax.f32 %v361, 0.0
        %v363 = vld [vmem:[%s3] sm:$0xff]
        %v364 = vld [vmem:[%s3 + $0x8] sm:$0xff]
        %v365 = vld [vmem:[%s3 + $0x10] sm:$0xff]
        %v366 = vld [vmem:[%s3 + $0x18] sm:$0xff]
        %v367 = vlaneseq
        %v368 = vshrl.u32 %v367, 7
        %v369 = vsub.s32 0, %v368
        %v370 = vrot.slane %v362, %v369
        %v371 = vmul.f32 %v363, %v370
        %v372 = vmul.f32 %v364, %v370
        %v373 = vmul.f32 %v365, %v370
        %v374 = vmul.f32 %v366, %v370
        %v375 = vsel %vm346, %v371, 0.0
        %376 = vadd.xlane.f32.xlu0 %v375
        %v377 = vpop.xlane.xlu0 %376
        %v378 = vsel %vm346, %v372, 0.0
        %379 = vadd.xlane.f32.xlu0 %v378
        %v380 = vpop.xlane.xlu0 %379
        %v381 = vsel %vm346, %v373, 0.0
        %382 = vadd.xlane.f32.xlu0 %v381
        %v383 = vpop.xlane.xlu0 %382
        %v384 = vsel %vm346, %v374, 0.0
        %385 = vadd.xlane.f32.xlu0 %v384
        %v386 = vpop.xlane.xlu0 %385
        %v387 = vld [vmem:[%s4] sm:$0xff]
        %v388 = vld [vmem:[%s4 + $0x8] sm:$0xff]
        %v389 = vld [vmem:[%s4 + $0x10] sm:$0xff]
        %v390 = vld [vmem:[%s4 + $0x18] sm:$0xff]
        %v391 = vadd.f32 %v377, %v387
        %v392 = vadd.f32 %v380, %v388
        %v393 = vadd.f32 %v383, %v389
        %v394 = vadd.f32 %v386, %v390
        %v395 = vmax.f32 %v391, 0.0
        %v396 = vmax.f32 %v392, 0.0
        %v397 = vmax.f32 %v393, 0.0
        %v398 = vmax.f32 %v394, 0.0
        %v399 = vadd.f32 %v395, %v395
        %v400 = vadd.f32 %v396, %v396
        %v401 = vadd.f32 %v397, %v397
        %v402 = vadd.f32 %v398, %v398
        %v403 = vxor.u32 %v399, 2147483648
        %v404 = vxor.u32 %v400, 2147483648
        %v405 = vxor.u32 %v401, 2147483648
        %v406 = vxor.u32 %v402, 2147483648
        %v407 = vmul.f32 %v403, 1.442695
        %v408 = vpow.pop %v407
        %v409 = vmul.f32 %v404, 1.442695
        %v410 = vpow.pop %v409
        %v411 = vmul.f32 %v405, 1.442695
        %v412 = vpow.pop %v411
        %v413 = vmul.f32 %v406, 1.442695
        %v414 = vpow.pop %v413
        %v415 = vadd.f32 %v408, 1.0
        %v416 = vadd.f32 %v410, 1.0
        %v417 = vadd.f32 %v412, 1.0
        %v418 = vadd.f32 %v414, 1.0
        %v419 = vrcp.pop %v415
        %v420 = vmul.f32 1.0, %v419
        %v421 = vrcp.pop %v416
        %v422 = vmul.f32 1.0, %v421
        %v423 = vrcp.pop %v417
        %v424 = vmul.f32 1.0, %v423
        %v425 = vrcp.pop %v418
        %v426 = vmul.f32 1.0, %v425
        %428 = vset.pattern.permute.xlu0 0
        %429 = vperm.xlu0 %428, %v420
        %v430 = vpop.permute.xlu0 %429
        %433 = vset.pattern.permute.xlu0 0
        %434 = vperm.xlu0 %433, %v422
        %v435 = vpop.permute.xlu0 %434
        %438 = vset.pattern.permute.xlu0 0
        %439 = vperm.xlu0 %438, %v424
        %v440 = vpop.permute.xlu0 %439
        %443 = vset.pattern.permute.xlu0 0
        %444 = vperm.xlu0 %443, %v426
        %v445 = vpop.permute.xlu0 %444
        %v447 = vmul.f32 %v313, %v430
        %v448 = vmul.f32 %v314, %v430
        %v449 = vmul.f32 %v315, %v435
        %v450 = vmul.f32 %v316, %v435
        %v451 = vmul.f32 %v317, %v440
        %v452 = vmul.f32 %v318, %v440
        %v453 = vmul.f32 %v319, %v445
        %v454 = vmul.f32 %v320, %v445
        %v455 = vadd.f32 %v447, %v449
        %v456 = vadd.f32 %v455, %v451
        %v457 = vadd.f32 %v456, %v453
        %v458 = vrot.slane %v457, 4
        %v459 = vadd.f32 %v457, %v458
        %v460 = vrot.slane %v459, 2
        %v461 = vadd.f32 %v459, %v460
        %v462 = vrot.slane %v461, 1
        %v463 = vadd.f32 %v461, %v462
        %v464 = vadd.f32 %v448, %v450
        %v465 = vadd.f32 %v464, %v452
        %v466 = vadd.f32 %v465, %v454
        %v467 = vrot.slane %v466, 4
        %v468 = vadd.f32 %v466, %v467
        %v469 = vrot.slane %v468, 2
        %v470 = vadd.f32 %v468, %v469
        %v471 = vrot.slane %v470, 1
        %v472 = vadd.f32 %v470, %v471
        %v473 = vrcp.pop 32.0
        %v474 = vmul.f32 %v463, %v473
        %v475 = vmul.f32 %v472, %v473
        %v476 = vmax.f32 %v447, %v451
        %v477 = vmax.f32 %v449, %v453
        %v478 = vmax.f32 %v476, %v477
        %v479 = vrot.slane %v478, 4
        %v480 = vmax.f32 %v478, %v479
        %v481 = vrot.slane %v480, 2
        %v482 = vmax.f32 %v480, %v481
        %v483 = vrot.slane %v482, 1
        %v484 = vmax.f32 %v482, %v483
        %v485 = vmax.f32 %v448, %v452
        %v486 = vmax.f32 %v450, %v454
        %v487 = vmax.f32 %v485, %v486
        %v488 = vrot.slane %v487, 4
        %v489 = vmax.f32 %v487, %v488
        %v490 = vrot.slane %v489, 2
        %v491 = vmax.f32 %v489, %v490
        %v492 = vrot.slane %v491, 1
        %v493 = vmax.f32 %v491, %v492
        %vm494 = vcmask 1040384
        %v495 = vsel %vm494, %v474, %v484
        %v496 = vsel %vm494, %v475, %v493
        %497 = vrot.lane.b32.xlu0 %v495, 51
        %v498 = vpop.permute.xlu0 %497
        %499 = vrot.lane.b32.xlu0 %v496, 51
        %v500 = vpop.permute.xlu0 %499
        %v501 = vlaneseq
        %v502 = vand.u32 %v501, 127
        %vm503 = vcmp.lt.s32.totalorder %v502, 51
        %v504 = vsel %vm503, %v498, %v500
        %v505 = vsel %vm503, %v500, %v498
        %v506 = vld [vmem:[#allocation6] sm:$0xf]
        %v509 = vcombine.low %v505, %v504
        %v511 = vunpack.c.l.s4 1983009808
        %v512 = vunpack.c.0.s8 %v511
        %v513 = vlaneseq
        %v514 = vshrl.u32 %v513, 7
        %v515 = vsub.s32 %v512, %v514
        %v516 = vrot.slane %v509, %v515
        %v518 = vmul.f32 %v506, %v516
        %v519 = vadd.f32 %v518, 0.0
        %520 = vrot.lane.b32.xlu0 %v495, 50
        %v521 = vpop.permute.xlu0 %520
        %522 = vrot.lane.b32.xlu0 %v496, 50
        %v523 = vpop.permute.xlu0 %522
        %vm524 = vcmp.lt.s32.totalorder %v502, 50
        %v525 = vsel %vm524, %v521, %v523
        %v526 = vsel %vm524, %v523, %v521
        %s527 = scalar_lea.vmem [#allocation6], 4
        %v528 = vld [vmem:[%s527] sm:$0xf]
        %v531 = vcombine.low %v526, %v525
        %v533 = vunpack.c.l.s4 1983009808
        %v534 = vunpack.c.0.s8 %v533
        %v535 = vlaneseq
        %v536 = vshrl.u32 %v535, 7
        %v537 = vsub.s32 %v534, %v536
        %v538 = vrot.slane %v531, %v537
        %v540 = vmul.f32 %v528, %v538
        %v541 = vadd.f32 %v540, 0.0
        %542 = vrot.lane.b32.xlu0 %v495, 49
        %v543 = vpop.permute.xlu0 %542
        %544 = vrot.lane.b32.xlu0 %v496, 49
        %v545 = vpop.permute.xlu0 %544
        %vm546 = vcmp.lt.s32.totalorder %v502, 49
        %v547 = vsel %vm546, %v543, %v545
        %v548 = vsel %vm546, %v545, %v543
        %s549 = scalar_lea.vmem [#allocation6], 8
        %v550 = vld [vmem:[%s549] sm:$0xf]
        %v553 = vcombine.low %v548, %v547
        %v555 = vunpack.c.l.s4 1983009808
        %v556 = vunpack.c.0.s8 %v555
        %v557 = vlaneseq
        %v558 = vshrl.u32 %v557, 7
        %v559 = vsub.s32 %v556, %v558
        %v560 = vrot.slane %v553, %v559
        %v562 = vmul.f32 %v550, %v560
        %v563 = vadd.f32 %v562, 0.0
        %564 = vrot.lane.b32.xlu0 %v495, 48
        %v565 = vpop.permute.xlu0 %564
        %566 = vrot.lane.b32.xlu0 %v496, 48
        %v567 = vpop.permute.xlu0 %566
        %vm568 = vcmp.lt.s32.totalorder %v502, 48
        %v569 = vsel %vm568, %v565, %v567
        %v570 = vsel %vm568, %v567, %v565
        %s571 = scalar_lea.vmem [#allocation6], 12
        %v572 = vld [vmem:[%s571] sm:$0xf]
        %v575 = vcombine.low %v570, %v569
        %v577 = vunpack.c.l.s4 1983009808
        %v578 = vunpack.c.0.s8 %v577
        %v579 = vlaneseq
        %v580 = vshrl.u32 %v579, 7
        %v581 = vsub.s32 %v578, %v580
        %v582 = vrot.slane %v575, %v581
        %v584 = vmul.f32 %v572, %v582
        %v585 = vadd.f32 %v584, 0.0
        %586 = vrot.lane.b32.xlu0 %v495, 47
        %v587 = vpop.permute.xlu0 %586
        %588 = vrot.lane.b32.xlu0 %v496, 47
        %v589 = vpop.permute.xlu0 %588
        %vm590 = vcmp.lt.s32.totalorder %v502, 47
        %v591 = vsel %vm590, %v587, %v589
        %v592 = vsel %vm590, %v589, %v587
        %s593 = scalar_lea.vmem [#allocation6], 16
        %v594 = vld [vmem:[%s593] sm:$0xf]
        %v597 = vcombine.low %v592, %v591
        %v599 = vunpack.c.l.s4 1983009808
        %v600 = vunpack.c.0.s8 %v599
        %v601 = vlaneseq
        %v602 = vshrl.u32 %v601, 7
        %v603 = vsub.s32 %v600, %v602
        %v604 = vrot.slane %v597, %v603
        %v606 = vmul.f32 %v594, %v604
        %v607 = vadd.f32 %v519, %v606
        %608 = vrot.lane.b32.xlu0 %v495, 46
        %v609 = vpop.permute.xlu0 %608
        %610 = vrot.lane.b32.xlu0 %v496, 46
        %v611 = vpop.permute.xlu0 %610
        %vm612 = vcmp.lt.s32.totalorder %v502, 46
        %v613 = vsel %vm612, %v609, %v611
        %v614 = vsel %vm612, %v611, %v609
        %s615 = scalar_lea.vmem [#allocation6], 20
        %v616 = vld [vmem:[%s615] sm:$0xf]
        %v619 = vcombine.low %v614, %v613
        %v621 = vunpack.c.l.s4 1983009808
        %v622 = vunpack.c.0.s8 %v621
        %v623 = vlaneseq
        %v624 = vshrl.u32 %v623, 7
        %v625 = vsub.s32 %v622, %v624
        %v626 = vrot.slane %v619, %v625
        %v628 = vmul.f32 %v616, %v626
        %v629 = vadd.f32 %v541, %v628
        %630 = vrot.lane.b32.xlu0 %v495, 45
        %v631 = vpop.permute.xlu0 %630
        %632 = vrot.lane.b32.xlu0 %v496, 45
        %v633 = vpop.permute.xlu0 %632
        %vm634 = vcmp.lt.s32.totalorder %v502, 45
        %v635 = vsel %vm634, %v631, %v633
        %v636 = vsel %vm634, %v633, %v631
        %s637 = scalar_lea.vmem [#allocation6], 24
        %v638 = vld [vmem:[%s637] sm:$0xf]
        %v641 = vcombine.low %v636, %v635
        %v643 = vunpack.c.l.s4 1983009808
        %v644 = vunpack.c.0.s8 %v643
        %v645 = vlaneseq
        %v646 = vshrl.u32 %v645, 7
        %v647 = vsub.s32 %v644, %v646
        %v648 = vrot.slane %v641, %v647
        %v650 = vmul.f32 %v638, %v648
        %v651 = vadd.f32 %v563, %v650
        %652 = vrot.lane.b32.xlu0 %v495, 35
        %v653 = vpop.permute.xlu0 %652
        %654 = vrot.lane.b32.xlu0 %v496, 35
        %v655 = vpop.permute.xlu0 %654
        %vm656 = vcmp.lt.s32.totalorder %v502, 35
        %v657 = vsel %vm656, %v653, %v655
        %v658 = vsel %vm656, %v655, %v653
        %s659 = scalar_lea.vmem [#allocation6], 28
        %v660 = vld [vmem:[%s659] sm:$0xf]
        %v663 = vcombine.low %v658, %v657
        %v665 = vunpack.c.l.s4 1983009808
        %v666 = vunpack.c.0.s8 %v665
        %v667 = vlaneseq
        %v668 = vshrl.u32 %v667, 7
        %v669 = vsub.s32 %v666, %v668
        %v670 = vrot.slane %v663, %v669
        %v672 = vmul.f32 %v660, %v670
        %v673 = vadd.f32 %v585, %v672
        %674 = vrot.lane.b32.xlu0 %v495, 34
        %v675 = vpop.permute.xlu0 %674
        %676 = vrot.lane.b32.xlu0 %v496, 34
        %v677 = vpop.permute.xlu0 %676
        %vm678 = vcmp.lt.s32.totalorder %v502, 34
        %v679 = vsel %vm678, %v675, %v677
        %v680 = vsel %vm678, %v677, %v675
        %s681 = scalar_lea.vmem [#allocation6], 32
        %v682 = vld [vmem:[%s681] sm:$0xf]
        %v685 = vcombine.low %v680, %v679
        %v687 = vunpack.c.l.s4 1983009808
        %v688 = vunpack.c.0.s8 %v687
        %v689 = vlaneseq
        %v690 = vshrl.u32 %v689, 7
        %v691 = vsub.s32 %v688, %v690
        %v692 = vrot.slane %v685, %v691
        %v694 = vmul.f32 %v682, %v692
        %v695 = vadd.f32 %v607, %v694
        %696 = vrot.lane.b32.xlu0 %v495, 33
        %v697 = vpop.permute.xlu0 %696
        %698 = vrot.lane.b32.xlu0 %v496, 33
        %v699 = vpop.permute.xlu0 %698
        %vm700 = vcmp.lt.s32.totalorder %v502, 33
        %v701 = vsel %vm700, %v697, %v699
        %v702 = vsel %vm700, %v699, %v697
        %s703 = scalar_lea.vmem [#allocation6], 36
        %v704 = vld [vmem:[%s703] sm:$0xf]
        %v707 = vcombine.low %v702, %v701
        %v709 = vunpack.c.l.s4 1983009808
        %v710 = vunpack.c.0.s8 %v709
        %v711 = vlaneseq
        %v712 = vshrl.u32 %v711, 7
        %v713 = vsub.s32 %v710, %v712
        %v714 = vrot.slane %v707, %v713
        %v716 = vmul.f32 %v704, %v714
        %v717 = vadd.f32 %v629, %v716
        %718 = vrot.lane.b32.xlu0 %v495, 32
        %v719 = vpop.permute.xlu0 %718
        %720 = vrot.lane.b32.xlu0 %v496, 32
        %v721 = vpop.permute.xlu0 %720
        %vm722 = vcmp.lt.s32.totalorder %v502, 32
        %v723 = vsel %vm722, %v719, %v721
        %v724 = vsel %vm722, %v721, %v719
        %s725 = scalar_lea.vmem [#allocation6], 40
        %v726 = vld [vmem:[%s725] sm:$0xf]
        %v729 = vcombine.low %v724, %v723
        %v731 = vunpack.c.l.s4 1983009808
        %v732 = vunpack.c.0.s8 %v731
        %v733 = vlaneseq
        %v734 = vshrl.u32 %v733, 7
        %v735 = vsub.s32 %v732, %v734
        %v736 = vrot.slane %v729, %v735
        %v738 = vmul.f32 %v726, %v736
        %v739 = vadd.f32 %v651, %v738
        %740 = vrot.lane.b32.xlu0 %v495, 31
        %v741 = vpop.permute.xlu0 %740
        %742 = vrot.lane.b32.xlu0 %v496, 31
        %v743 = vpop.permute.xlu0 %742
        %vm744 = vcmp.lt.s32.totalorder %v502, 31
        %v745 = vsel %vm744, %v741, %v743
        %v746 = vsel %vm744, %v743, %v741
        %s747 = scalar_lea.vmem [#allocation6], 44
        %v748 = vld [vmem:[%s747] sm:$0xf]
        %v751 = vcombine.low %v746, %v745
        %v753 = vunpack.c.l.s4 1983009808
        %v754 = vunpack.c.0.s8 %v753
        %v755 = vlaneseq
        %v756 = vshrl.u32 %v755, 7
        %v757 = vsub.s32 %v754, %v756
        %v758 = vrot.slane %v751, %v757
        %v760 = vmul.f32 %v748, %v758
        %v761 = vadd.f32 %v673, %v760
        %762 = vrot.lane.b32.xlu0 %v495, 30
        %v763 = vpop.permute.xlu0 %762
        %764 = vrot.lane.b32.xlu0 %v496, 30
        %v765 = vpop.permute.xlu0 %764
        %vm766 = vcmp.lt.s32.totalorder %v502, 30
        %v767 = vsel %vm766, %v763, %v765
        %v768 = vsel %vm766, %v765, %v763
        %s769 = scalar_lea.vmem [#allocation6], 48
        %v770 = vld [vmem:[%s769] sm:$0xf]
        %v773 = vcombine.low %v768, %v767
        %v775 = vunpack.c.l.s4 1983009808
        %v776 = vunpack.c.0.s8 %v775
        %v777 = vlaneseq
        %v778 = vshrl.u32 %v777, 7
        %v779 = vsub.s32 %v776, %v778
        %v780 = vrot.slane %v773, %v779
        %v782 = vmul.f32 %v770, %v780
        %v783 = vadd.f32 %v695, %v782
        %784 = vrot.lane.b32.xlu0 %v495, 29
        %v785 = vpop.permute.xlu0 %784
        %786 = vrot.lane.b32.xlu0 %v496, 29
        %v787 = vpop.permute.xlu0 %786
        %vm788 = vcmp.lt.s32.totalorder %v502, 29
        %v789 = vsel %vm788, %v785, %v787
        %v790 = vsel %vm788, %v787, %v785
        %s791 = scalar_lea.vmem [#allocation6], 52
        %v792 = vld [vmem:[%s791] sm:$0xf]
        %v795 = vcombine.low %v790, %v789
        %v797 = vunpack.c.l.s4 1983009808
        %v798 = vunpack.c.0.s8 %v797
        %v799 = vlaneseq
        %v800 = vshrl.u32 %v799, 7
        %v801 = vsub.s32 %v798, %v800
        %v802 = vrot.slane %v795, %v801
        %v804 = vmul.f32 %v792, %v802
        %v805 = vadd.f32 %v717, %v804
        %806 = vrot.lane.b32.xlu0 %v495, 19
        %v807 = vpop.permute.xlu0 %806
        %808 = vrot.lane.b32.xlu0 %v496, 19
        %v809 = vpop.permute.xlu0 %808
        %vm810 = vcmp.lt.s32.totalorder %v502, 19
        %v811 = vsel %vm810, %v807, %v809
        %v812 = vsel %vm810, %v809, %v807
        %s813 = scalar_lea.vmem [#allocation6], 56
        %v814 = vld [vmem:[%s813] sm:$0xf]
        %v817 = vcombine.low %v812, %v811
        %v819 = vunpack.c.l.s4 1983009808
        %v820 = vunpack.c.0.s8 %v819
        %v821 = vlaneseq
        %v822 = vshrl.u32 %v821, 7
        %v823 = vsub.s32 %v820, %v822
        %v824 = vrot.slane %v817, %v823
        %v826 = vmul.f32 %v814, %v824
        %v827 = vadd.f32 %v739, %v826
        %828 = vrot.lane.b32.xlu0 %v495, 18
        %v829 = vpop.permute.xlu0 %828
        %830 = vrot.lane.b32.xlu0 %v496, 18
        %v831 = vpop.permute.xlu0 %830
        %vm832 = vcmp.lt.s32.totalorder %v502, 18
        %v833 = vsel %vm832, %v829, %v831
        %v834 = vsel %vm832, %v831, %v829
        %s835 = scalar_lea.vmem [#allocation6], 60
        %v836 = vld [vmem:[%s835] sm:$0xf]
        %v839 = vcombine.low %v834, %v833
        %v841 = vunpack.c.l.s4 1983009808
        %v842 = vunpack.c.0.s8 %v841
        %v843 = vlaneseq
        %v844 = vshrl.u32 %v843, 7
        %v845 = vsub.s32 %v842, %v844
        %v846 = vrot.slane %v839, %v845
        %v848 = vmul.f32 %v836, %v846
        %v849 = vadd.f32 %v761, %v848
        %850 = vrot.lane.b32.xlu0 %v495, 17
        %v851 = vpop.permute.xlu0 %850
        %852 = vrot.lane.b32.xlu0 %v496, 17
        %v853 = vpop.permute.xlu0 %852
        %vm854 = vcmp.lt.s32.totalorder %v502, 17
        %v855 = vsel %vm854, %v851, %v853
        %v856 = vsel %vm854, %v853, %v851
        %s857 = scalar_lea.vmem [#allocation6], 64
        %v858 = vld [vmem:[%s857] sm:$0xf]
        %v861 = vcombine.low %v856, %v855
        %v863 = vunpack.c.l.s4 1983009808
        %v864 = vunpack.c.0.s8 %v863
        %v865 = vlaneseq
        %v866 = vshrl.u32 %v865, 7
        %v867 = vsub.s32 %v864, %v866
        %v868 = vrot.slane %v861, %v867
        %v870 = vmul.f32 %v858, %v868
        %v871 = vadd.f32 %v783, %v870
        %872 = vrot.lane.b32.xlu0 %v495, 16
        %v873 = vpop.permute.xlu0 %872
        %874 = vrot.lane.b32.xlu0 %v496, 16
        %v875 = vpop.permute.xlu0 %874
        %vm876 = vcmp.lt.s32.totalorder %v502, 16
        %v877 = vsel %vm876, %v873, %v875
        %v878 = vsel %vm876, %v875, %v873
        %s879 = scalar_lea.vmem [#allocation6], 68
        %v880 = vld [vmem:[%s879] sm:$0xf]
        %v883 = vcombine.low %v878, %v877
        %v885 = vunpack.c.l.s4 1983009808
        %v886 = vunpack.c.0.s8 %v885
        %v887 = vlaneseq
        %v888 = vshrl.u32 %v887, 7
        %v889 = vsub.s32 %v886, %v888
        %v890 = vrot.slane %v883, %v889
        %v892 = vmul.f32 %v880, %v890
        %v893 = vadd.f32 %v805, %v892
        %894 = vrot.lane.b32.xlu0 %v495, 15
        %v895 = vpop.permute.xlu0 %894
        %896 = vrot.lane.b32.xlu0 %v496, 15
        %v897 = vpop.permute.xlu0 %896
        %vm898 = vcmp.lt.s32.totalorder %v502, 15
        %v899 = vsel %vm898, %v895, %v897
        %v900 = vsel %vm898, %v897, %v895
        %s901 = scalar_lea.vmem [#allocation6], 72
        %v902 = vld [vmem:[%s901] sm:$0xf]
        %v905 = vcombine.low %v900, %v899
        %v907 = vunpack.c.l.s4 1983009808
        %v908 = vunpack.c.0.s8 %v907
        %v909 = vlaneseq
        %v910 = vshrl.u32 %v909, 7
        %v911 = vsub.s32 %v908, %v910
        %v912 = vrot.slane %v905, %v911
        %v914 = vmul.f32 %v902, %v912
        %v915 = vadd.f32 %v827, %v914
        %916 = vrot.lane.b32.xlu0 %v495, 14
        %v917 = vpop.permute.xlu0 %916
        %918 = vrot.lane.b32.xlu0 %v496, 14
        %v919 = vpop.permute.xlu0 %918
        %vm920 = vcmp.lt.s32.totalorder %v502, 14
        %v921 = vsel %vm920, %v917, %v919
        %v922 = vsel %vm920, %v919, %v917
        %s923 = scalar_lea.vmem [#allocation6], 76
        %v924 = vld [vmem:[%s923] sm:$0xf]
        %v927 = vcombine.low %v922, %v921
        %v929 = vunpack.c.l.s4 1983009808
        %v930 = vunpack.c.0.s8 %v929
        %v931 = vlaneseq
        %v932 = vshrl.u32 %v931, 7
        %v933 = vsub.s32 %v930, %v932
        %v934 = vrot.slane %v927, %v933
        %v936 = vmul.f32 %v924, %v934
        %v937 = vadd.f32 %v849, %v936
        %938 = vrot.lane.b32.xlu0 %v495, 13
        %v939 = vpop.permute.xlu0 %938
        %940 = vrot.lane.b32.xlu0 %v496, 13
        %v941 = vpop.permute.xlu0 %940
        %vm942 = vcmp.lt.s32.totalorder %v502, 13
        %v943 = vsel %vm942, %v939, %v941
        %v944 = vsel %vm942, %v941, %v939
        %s945 = scalar_lea.vmem [#allocation6], 80
        %v946 = vld [vmem:[%s945] sm:$0xf]
        %v949 = vcombine.low %v944, %v943
        %v951 = vunpack.c.l.s4 1983009808
        %v952 = vunpack.c.0.s8 %v951
        %v953 = vlaneseq
        %v954 = vshrl.u32 %v953, 7
        %v955 = vsub.s32 %v952, %v954
        %v956 = vrot.slane %v949, %v955
        %v958 = vmul.f32 %v946, %v956
        %v959 = vadd.f32 %v871, %v958
        %960 = vrot.lane.b32.xlu0 %v495, 3
        %v961 = vpop.permute.xlu0 %960
        %962 = vrot.lane.b32.xlu0 %v496, 3
        %v963 = vpop.permute.xlu0 %962
        %vm964 = vcmp.lt.s32.totalorder %v502, 3
        %v965 = vsel %vm964, %v961, %v963
        %v966 = vsel %vm964, %v963, %v961
        %s967 = scalar_lea.vmem [#allocation6], 84
        %v968 = vld [vmem:[%s967] sm:$0xf]
        %v971 = vcombine.low %v966, %v965
        %v973 = vunpack.c.l.s4 1983009808
        %v974 = vunpack.c.0.s8 %v973
        %v975 = vlaneseq
        %v976 = vshrl.u32 %v975, 7
        %v977 = vsub.s32 %v974, %v976
        %v978 = vrot.slane %v971, %v977
        %v980 = vmul.f32 %v968, %v978
        %v981 = vadd.f32 %v893, %v980
        %982 = vrot.lane.b32.xlu0 %v495, 2
        %v983 = vpop.permute.xlu0 %982
        %984 = vrot.lane.b32.xlu0 %v496, 2
        %v985 = vpop.permute.xlu0 %984
        %vm986 = vcmp.lt.s32.totalorder %v502, 2
        %v987 = vsel %vm986, %v983, %v985
        %v988 = vsel %vm986, %v985, %v983
        %s989 = scalar_lea.vmem [#allocation6], 88
        %v990 = vld [vmem:[%s989] sm:$0xf]
        %v993 = vcombine.low %v988, %v987
        %v995 = vunpack.c.l.s4 1983009808
        %v996 = vunpack.c.0.s8 %v995
        %v997 = vlaneseq
        %v998 = vshrl.u32 %v997, 7
        %v999 = vsub.s32 %v996, %v998
        %v1000 = vrot.slane %v993, %v999
        %v1002 = vmul.f32 %v990, %v1000
        %v1003 = vadd.f32 %v915, %v1002
        %1004 = vrot.lane.b32.xlu0 %v495, 1
        %v1005 = vpop.permute.xlu0 %1004
        %1006 = vrot.lane.b32.xlu0 %v496, 1
        %v1007 = vpop.permute.xlu0 %1006
        %vm1008 = vcmp.lt.s32.totalorder %v502, 1
        %v1009 = vsel %vm1008, %v1005, %v1007
        %v1010 = vsel %vm1008, %v1007, %v1005
        %s1011 = scalar_lea.vmem [#allocation6], 92
        %v1012 = vld [vmem:[%s1011] sm:$0xf]
        %v1015 = vcombine.low %v1010, %v1009
        %v1017 = vunpack.c.l.s4 1983009808
        %v1018 = vunpack.c.0.s8 %v1017
        %v1019 = vlaneseq
        %v1020 = vshrl.u32 %v1019, 7
        %v1021 = vsub.s32 %v1018, %v1020
        %v1022 = vrot.slane %v1015, %v1021
        %v1024 = vmul.f32 %v1012, %v1022
        %v1025 = vadd.f32 %v937, %v1024
        %s1026 = scalar_lea.vmem [#allocation6], 96
        %v1027 = vld [vmem:[%s1026] sm:$0xf]
        %v1030 = vcombine.low %v495, %v496
        %v1032 = vunpack.c.l.s4 1983009808
        %v1033 = vunpack.c.0.s8 %v1032
        %v1034 = vlaneseq
        %v1035 = vshrl.u32 %v1034, 7
        %v1036 = vsub.s32 %v1033, %v1035
        %v1037 = vrot.slane %v1030, %v1036
        %v1039 = vmul.f32 %v1027, %v1037
        %v1040 = vadd.f32 %v959, %v1039
        %1041 = vrot.lane.b32.xlu0 %v495, 127
        %v1042 = vpop.permute.xlu0 %1041
        %1043 = vrot.lane.b32.xlu0 %v496, 127
        %v1044 = vpop.permute.xlu0 %1043
        %vm1045 = vcmp.lt.s32.totalorder %v502, 127
        %v1046 = vsel %vm1045, %v1042, %v1044
        %v1047 = vsel %vm1045, %v1044, %v1042
        %s1048 = scalar_lea.vmem [#allocation6], 100
        %v1049 = vld [vmem:[%s1048] sm:$0xf]
        %v1052 = vcombine.low %v1046, %v1047
        %v1054 = vunpack.c.l.s4 1983009808
        %v1055 = vunpack.c.0.s8 %v1054
        %v1056 = vlaneseq
        %v1057 = vshrl.u32 %v1056, 7
        %v1058 = vsub.s32 %v1055, %v1057
        %v1059 = vrot.slane %v1052, %v1058
        %v1061 = vmul.f32 %v1049, %v1059
        %v1062 = vadd.f32 %v981, %v1061
        %1063 = vrot.lane.b32.xlu0 %v495, 126
        %v1064 = vpop.permute.xlu0 %1063
        %1065 = vrot.lane.b32.xlu0 %v496, 126
        %v1066 = vpop.permute.xlu0 %1065
        %vm1067 = vcmp.lt.s32.totalorder %v502, 126
        %v1068 = vsel %vm1067, %v1064, %v1066
        %v1069 = vsel %vm1067, %v1066, %v1064
        %s1070 = scalar_lea.vmem [#allocation6], 104
        %v1071 = vld [vmem:[%s1070] sm:$0xf]
        %v1074 = vcombine.low %v1068, %v1069
        %v1076 = vunpack.c.l.s4 1983009808
        %v1077 = vunpack.c.0.s8 %v1076
        %v1078 = vlaneseq
        %v1079 = vshrl.u32 %v1078, 7
        %v1080 = vsub.s32 %v1077, %v1079
        %v1081 = vrot.slane %v1074, %v1080
        %v1083 = vmul.f32 %v1071, %v1081
        %v1084 = vadd.f32 %v1003, %v1083
        %1085 = vrot.lane.b32.xlu0 %v495, 125
        %v1086 = vpop.permute.xlu0 %1085
        %1087 = vrot.lane.b32.xlu0 %v496, 125
        %v1088 = vpop.permute.xlu0 %1087
        %vm1089 = vcmp.lt.s32.totalorder %v502, 125
        %v1090 = vsel %vm1089, %v1086, %v1088
        %v1091 = vsel %vm1089, %v1088, %v1086
        %s1092 = scalar_lea.vmem [#allocation6], 108
        %v1093 = vld [vmem:[%s1092] sm:$0xf]
        %v1096 = vcombine.low %v1090, %v1091
        %v1098 = vunpack.c.l.s4 1983009808
        %v1099 = vunpack.c.0.s8 %v1098
        %v1100 = vlaneseq
        %v1101 = vshrl.u32 %v1100, 7
        %v1102 = vsub.s32 %v1099, %v1101
        %v1103 = vrot.slane %v1096, %v1102
        %v1105 = vmul.f32 %v1093, %v1103
        %v1106 = vadd.f32 %v1025, %v1105
        %1107 = vrot.lane.b32.xlu0 %v495, 115
        %v1108 = vpop.permute.xlu0 %1107
        %1109 = vrot.lane.b32.xlu0 %v496, 115
        %v1110 = vpop.permute.xlu0 %1109
        %vm1111 = vcmp.lt.s32.totalorder %v502, 115
        %v1112 = vsel %vm1111, %v1108, %v1110
        %v1113 = vsel %vm1111, %v1110, %v1108
        %s1114 = scalar_lea.vmem [#allocation6], 112
        %v1115 = vld [vmem:[%s1114] sm:$0xf]
        %v1118 = vcombine.low %v1112, %v1113
        %v1120 = vunpack.c.l.s4 1983009808
        %v1121 = vunpack.c.0.s8 %v1120
        %v1122 = vlaneseq
        %v1123 = vshrl.u32 %v1122, 7
        %v1124 = vsub.s32 %v1121, %v1123
        %v1125 = vrot.slane %v1118, %v1124
        %v1127 = vmul.f32 %v1115, %v1125
        %v1128 = vadd.f32 %v1040, %v1127
        %1129 = vrot.lane.b32.xlu0 %v495, 114
        %v1130 = vpop.permute.xlu0 %1129
        %1131 = vrot.lane.b32.xlu0 %v496, 114
        %v1132 = vpop.permute.xlu0 %1131
        %vm1133 = vcmp.lt.s32.totalorder %v502, 114
        %v1134 = vsel %vm1133, %v1130, %v1132
        %v1135 = vsel %vm1133, %v1132, %v1130
        %s1136 = scalar_lea.vmem [#allocation6], 116
        %v1137 = vld [vmem:[%s1136] sm:$0xf]
        %v1140 = vcombine.low %v1134, %v1135
        %v1142 = vunpack.c.l.s4 1983009808
        %v1143 = vunpack.c.0.s8 %v1142
        %v1144 = vlaneseq
        %v1145 = vshrl.u32 %v1144, 7
        %v1146 = vsub.s32 %v1143, %v1145
        %v1147 = vrot.slane %v1140, %v1146
        %v1149 = vmul.f32 %v1137, %v1147
        %v1150 = vadd.f32 %v1062, %v1149
        %1151 = vrot.lane.b32.xlu0 %v495, 113
        %v1152 = vpop.permute.xlu0 %1151
        %1153 = vrot.lane.b32.xlu0 %v496, 113
        %v1154 = vpop.permute.xlu0 %1153
        %vm1155 = vcmp.lt.s32.totalorder %v502, 113
        %v1156 = vsel %vm1155, %v1152, %v1154
        %v1157 = vsel %vm1155, %v1154, %v1152
        %s1158 = scalar_lea.vmem [#allocation6], 120
        %v1159 = vld [vmem:[%s1158] sm:$0xf]
        %v1162 = vcombine.low %v1156, %v1157
        %v1164 = vunpack.c.l.s4 1983009808
        %v1165 = vunpack.c.0.s8 %v1164
        %v1166 = vlaneseq
        %v1167 = vshrl.u32 %v1166, 7
        %v1168 = vsub.s32 %v1165, %v1167
        %v1169 = vrot.slane %v1162, %v1168
        %v1171 = vmul.f32 %v1159, %v1169
        %v1172 = vadd.f32 %v1084, %v1171
        %1173 = vrot.lane.b32.xlu0 %v495, 112
        %v1174 = vpop.permute.xlu0 %1173
        %1175 = vrot.lane.b32.xlu0 %v496, 112
        %v1176 = vpop.permute.xlu0 %1175
        %vm1177 = vcmp.lt.s32.totalorder %v502, 112
        %v1178 = vsel %vm1177, %v1174, %v1176
        %v1179 = vsel %vm1177, %v1176, %v1174
        %s1180 = scalar_lea.vmem [#allocation6], 124
        %v1181 = vld [vmem:[%s1180] sm:$0xf]
        %v1184 = vcombine.low %v1178, %v1179
        %v1186 = vunpack.c.l.s4 1983009808
        %v1187 = vunpack.c.0.s8 %v1186
        %v1188 = vlaneseq
        %v1189 = vshrl.u32 %v1188, 7
        %v1190 = vsub.s32 %v1187, %v1189
        %v1191 = vrot.slane %v1184, %v1190
        %v1193 = vmul.f32 %v1181, %v1191
        %v1194 = vadd.f32 %v1106, %v1193
        %1195 = vrot.lane.b32.xlu0 %v495, 111
        %v1196 = vpop.permute.xlu0 %1195
        %1197 = vrot.lane.b32.xlu0 %v496, 111
        %v1198 = vpop.permute.xlu0 %1197
        %vm1199 = vcmp.lt.s32.totalorder %v502, 111
        %v1200 = vsel %vm1199, %v1196, %v1198
        %v1201 = vsel %vm1199, %v1198, %v1196
        %s1202 = scalar_lea.vmem [#allocation6], 128
        %v1203 = vld [vmem:[%s1202] sm:$0xf]
        %v1206 = vcombine.low %v1200, %v1201
        %v1208 = vunpack.c.l.s4 1983009808
        %v1209 = vunpack.c.0.s8 %v1208
        %v1210 = vlaneseq
        %v1211 = vshrl.u32 %v1210, 7
        %v1212 = vsub.s32 %v1209, %v1211
        %v1213 = vrot.slane %v1206, %v1212
        %v1215 = vmul.f32 %v1203, %v1213
        %v1216 = vadd.f32 %v1128, %v1215
        %1217 = vrot.lane.b32.xlu0 %v495, 110
        %v1218 = vpop.permute.xlu0 %1217
        %1219 = vrot.lane.b32.xlu0 %v496, 110
        %v1220 = vpop.permute.xlu0 %1219
        %vm1221 = vcmp.lt.s32.totalorder %v502, 110
        %v1222 = vsel %vm1221, %v1218, %v1220
        %v1223 = vsel %vm1221, %v1220, %v1218
        %s1224 = scalar_lea.vmem [#allocation6], 132
        %v1225 = vld [vmem:[%s1224] sm:$0xf]
        %v1228 = vcombine.low %v1222, %v1223
        %v1230 = vunpack.c.l.s4 1983009808
        %v1231 = vunpack.c.0.s8 %v1230
        %v1232 = vlaneseq
        %v1233 = vshrl.u32 %v1232, 7
        %v1234 = vsub.s32 %v1231, %v1233
        %v1235 = vrot.slane %v1228, %v1234
        %v1237 = vmul.f32 %v1225, %v1235
        %v1238 = vadd.f32 %v1150, %v1237
        %1239 = vrot.lane.b32.xlu0 %v495, 109
        %v1240 = vpop.permute.xlu0 %1239
        %1241 = vrot.lane.b32.xlu0 %v496, 109
        %v1242 = vpop.permute.xlu0 %1241
        %vm1243 = vcmp.lt.s32.totalorder %v502, 109
        %v1244 = vsel %vm1243, %v1240, %v1242
        %v1245 = vsel %vm1243, %v1242, %v1240
        %s1246 = scalar_lea.vmem [#allocation6], 136
        %v1247 = vld [vmem:[%s1246] sm:$0xf]
        %v1250 = vcombine.low %v1244, %v1245
        %v1252 = vunpack.c.l.s4 1983009808
        %v1253 = vunpack.c.0.s8 %v1252
        %v1254 = vlaneseq
        %v1255 = vshrl.u32 %v1254, 7
        %v1256 = vsub.s32 %v1253, %v1255
        %v1257 = vrot.slane %v1250, %v1256
        %v1259 = vmul.f32 %v1247, %v1257
        %v1260 = vadd.f32 %v1172, %v1259
        %1261 = vrot.lane.b32.xlu0 %v495, 99
        %v1262 = vpop.permute.xlu0 %1261
        %1263 = vrot.lane.b32.xlu0 %v496, 99
        %v1264 = vpop.permute.xlu0 %1263
        %vm1265 = vcmp.lt.s32.totalorder %v502, 99
        %v1266 = vsel %vm1265, %v1262, %v1264
        %v1267 = vsel %vm1265, %v1264, %v1262
        %s1268 = scalar_lea.vmem [#allocation6], 140
        %v1269 = vld [vmem:[%s1268] sm:$0xf]
        %v1272 = vcombine.low %v1266, %v1267
        %v1274 = vunpack.c.l.s4 1983009808
        %v1275 = vunpack.c.0.s8 %v1274
        %v1276 = vlaneseq
        %v1277 = vshrl.u32 %v1276, 7
        %v1278 = vsub.s32 %v1275, %v1277
        %v1279 = vrot.slane %v1272, %v1278
        %v1281 = vmul.f32 %v1269, %v1279
        %v1282 = vadd.f32 %v1194, %v1281
        %1283 = vrot.lane.b32.xlu0 %v495, 98
        %v1284 = vpop.permute.xlu0 %1283
        %1285 = vrot.lane.b32.xlu0 %v496, 98
        %v1286 = vpop.permute.xlu0 %1285
        %vm1287 = vcmp.lt.s32.totalorder %v502, 98
        %v1288 = vsel %vm1287, %v1284, %v1286
        %v1289 = vsel %vm1287, %v1286, %v1284
        %s1290 = scalar_lea.vmem [#allocation6], 144
        %v1291 = vld [vmem:[%s1290] sm:$0xf]
        %v1294 = vcombine.low %v1288, %v1289
        %v1296 = vunpack.c.l.s4 1983009808
        %v1297 = vunpack.c.0.s8 %v1296
        %v1298 = vlaneseq
        %v1299 = vshrl.u32 %v1298, 7
        %v1300 = vsub.s32 %v1297, %v1299
        %v1301 = vrot.slane %v1294, %v1300
        %v1303 = vmul.f32 %v1291, %v1301
        %v1304 = vadd.f32 %v1216, %v1303
        %1305 = vrot.lane.b32.xlu0 %v495, 97
        %v1306 = vpop.permute.xlu0 %1305
        %1307 = vrot.lane.b32.xlu0 %v496, 97
        %v1308 = vpop.permute.xlu0 %1307
        %vm1309 = vcmp.lt.s32.totalorder %v502, 97
        %v1310 = vsel %vm1309, %v1306, %v1308
        %v1311 = vsel %vm1309, %v1308, %v1306
        %s1312 = scalar_lea.vmem [#allocation6], 148
        %v1313 = vld [vmem:[%s1312] sm:$0xf]
        %v1316 = vcombine.low %v1310, %v1311
        %v1318 = vunpack.c.l.s4 1983009808
        %v1319 = vunpack.c.0.s8 %v1318
        %v1320 = vlaneseq
        %v1321 = vshrl.u32 %v1320, 7
        %v1322 = vsub.s32 %v1319, %v1321
        %v1323 = vrot.slane %v1316, %v1322
        %v1325 = vmul.f32 %v1313, %v1323
        %v1326 = vadd.f32 %v1238, %v1325
        %1327 = vrot.lane.b32.xlu0 %v495, 96
        %v1328 = vpop.permute.xlu0 %1327
        %1329 = vrot.lane.b32.xlu0 %v496, 96
        %v1330 = vpop.permute.xlu0 %1329
        %vm1331 = vcmp.lt.s32.totalorder %v502, 96
        %v1332 = vsel %vm1331, %v1328, %v1330
        %v1333 = vsel %vm1331, %v1330, %v1328
        %s1334 = scalar_lea.vmem [#allocation6], 152
        %v1335 = vld [vmem:[%s1334] sm:$0xf]
        %v1338 = vcombine.low %v1332, %v1333
        %v1340 = vunpack.c.l.s4 1983009808
        %v1341 = vunpack.c.0.s8 %v1340
        %v1342 = vlaneseq
        %v1343 = vshrl.u32 %v1342, 7
        %v1344 = vsub.s32 %v1341, %v1343
        %v1345 = vrot.slane %v1338, %v1344
        %v1347 = vmul.f32 %v1335, %v1345
        %v1348 = vadd.f32 %v1260, %v1347
        %1349 = vrot.lane.b32.xlu0 %v495, 95
        %v1350 = vpop.permute.xlu0 %1349
        %1351 = vrot.lane.b32.xlu0 %v496, 95
        %v1352 = vpop.permute.xlu0 %1351
        %vm1353 = vcmp.lt.s32.totalorder %v502, 95
        %v1354 = vsel %vm1353, %v1350, %v1352
        %v1355 = vsel %vm1353, %v1352, %v1350
        %s1356 = scalar_lea.vmem [#allocation6], 156
        %v1357 = vld [vmem:[%s1356] sm:$0xf]
        %v1360 = vcombine.low %v1354, %v1355
        %v1362 = vunpack.c.l.s4 1983009808
        %v1363 = vunpack.c.0.s8 %v1362
        %v1364 = vlaneseq
        %v1365 = vshrl.u32 %v1364, 7
        %v1366 = vsub.s32 %v1363, %v1365
        %v1367 = vrot.slane %v1360, %v1366
        %v1369 = vmul.f32 %v1357, %v1367
        %v1370 = vadd.f32 %v1282, %v1369
        %1371 = vrot.lane.b32.xlu0 %v495, 94
        %v1372 = vpop.permute.xlu0 %1371
        %1373 = vrot.lane.b32.xlu0 %v496, 94
        %v1374 = vpop.permute.xlu0 %1373
        %vm1375 = vcmp.lt.s32.totalorder %v502, 94
        %v1376 = vsel %vm1375, %v1372, %v1374
        %v1377 = vsel %vm1375, %v1374, %v1372
        %s1378 = scalar_lea.vmem [#allocation6], 160
        %v1379 = vld [vmem:[%s1378] sm:$0xf]
        %v1382 = vcombine.low %v1376, %v1377
        %v1384 = vunpack.c.l.s4 1983009808
        %v1385 = vunpack.c.0.s8 %v1384
        %v1386 = vlaneseq
        %v1387 = vshrl.u32 %v1386, 7
        %v1388 = vsub.s32 %v1385, %v1387
        %v1389 = vrot.slane %v1382, %v1388
        %v1391 = vmul.f32 %v1379, %v1389
        %v1392 = vadd.f32 %v1304, %v1391
        %1393 = vrot.lane.b32.xlu0 %v495, 93
        %v1394 = vpop.permute.xlu0 %1393
        %1395 = vrot.lane.b32.xlu0 %v496, 93
        %v1396 = vpop.permute.xlu0 %1395
        %vm1397 = vcmp.lt.s32.totalorder %v502, 93
        %v1398 = vsel %vm1397, %v1394, %v1396
        %v1399 = vsel %vm1397, %v1396, %v1394
        %s1400 = scalar_lea.vmem [#allocation6], 164
        %v1401 = vld [vmem:[%s1400] sm:$0xf]
        %v1404 = vcombine.low %v1398, %v1399
        %v1406 = vunpack.c.l.s4 1983009808
        %v1407 = vunpack.c.0.s8 %v1406
        %v1408 = vlaneseq
        %v1409 = vshrl.u32 %v1408, 7
        %v1410 = vsub.s32 %v1407, %v1409
        %v1411 = vrot.slane %v1404, %v1410
        %v1413 = vmul.f32 %v1401, %v1411
        %v1414 = vadd.f32 %v1326, %v1413
        %1415 = vrot.lane.b32.xlu0 %v495, 83
        %v1416 = vpop.permute.xlu0 %1415
        %1417 = vrot.lane.b32.xlu0 %v496, 83
        %v1418 = vpop.permute.xlu0 %1417
        %vm1419 = vcmp.lt.s32.totalorder %v502, 83
        %v1420 = vsel %vm1419, %v1416, %v1418
        %v1421 = vsel %vm1419, %v1418, %v1416
        %s1422 = scalar_lea.vmem [#allocation6], 168
        %v1423 = vld [vmem:[%s1422] sm:$0xf]
        %v1426 = vcombine.low %v1420, %v1421
        %v1428 = vunpack.c.l.s4 1983009808
        %v1429 = vunpack.c.0.s8 %v1428
        %v1430 = vlaneseq
        %v1431 = vshrl.u32 %v1430, 7
        %v1432 = vsub.s32 %v1429, %v1431
        %v1433 = vrot.slane %v1426, %v1432
        %v1435 = vmul.f32 %v1423, %v1433
        %v1436 = vadd.f32 %v1348, %v1435
        %1437 = vrot.lane.b32.xlu0 %v495, 82
        %v1438 = vpop.permute.xlu0 %1437
        %1439 = vrot.lane.b32.xlu0 %v496, 82
        %v1440 = vpop.permute.xlu0 %1439
        %vm1441 = vcmp.lt.s32.totalorder %v502, 82
        %v1442 = vsel %vm1441, %v1438, %v1440
        %v1443 = vsel %vm1441, %v1440, %v1438
        %s1444 = scalar_lea.vmem [#allocation6], 172
        %v1445 = vld [vmem:[%s1444] sm:$0xf]
        %v1448 = vcombine.low %v1442, %v1443
        %v1450 = vunpack.c.l.s4 1983009808
        %v1451 = vunpack.c.0.s8 %v1450
        %v1452 = vlaneseq
        %v1453 = vshrl.u32 %v1452, 7
        %v1454 = vsub.s32 %v1451, %v1453
        %v1455 = vrot.slane %v1448, %v1454
        %v1457 = vmul.f32 %v1445, %v1455
        %v1458 = vadd.f32 %v1370, %v1457
        %1459 = vrot.lane.b32.xlu0 %v495, 81
        %v1460 = vpop.permute.xlu0 %1459
        %1461 = vrot.lane.b32.xlu0 %v496, 81
        %v1462 = vpop.permute.xlu0 %1461
        %vm1463 = vcmp.lt.s32.totalorder %v502, 81
        %v1464 = vsel %vm1463, %v1460, %v1462
        %v1465 = vsel %vm1463, %v1462, %v1460
        %s1466 = scalar_lea.vmem [#allocation6], 176
        %v1467 = vld [vmem:[%s1466] sm:$0xf]
        %v1470 = vcombine.low %v1464, %v1465
        %v1472 = vunpack.c.l.s4 1983009808
        %v1473 = vunpack.c.0.s8 %v1472
        %v1474 = vlaneseq
        %v1475 = vshrl.u32 %v1474, 7
        %v1476 = vsub.s32 %v1473, %v1475
        %v1477 = vrot.slane %v1470, %v1476
        %v1479 = vmul.f32 %v1467, %v1477
        %v1480 = vadd.f32 %v1392, %v1479
        %1481 = vrot.lane.b32.xlu0 %v495, 80
        %v1482 = vpop.permute.xlu0 %1481
        %1483 = vrot.lane.b32.xlu0 %v496, 80
        %v1484 = vpop.permute.xlu0 %1483
        %vm1485 = vcmp.lt.s32.totalorder %v502, 80
        %v1486 = vsel %vm1485, %v1482, %v1484
        %v1487 = vsel %vm1485, %v1484, %v1482
        %s1488 = scalar_lea.vmem [#allocation6], 180
        %v1489 = vld [vmem:[%s1488] sm:$0xf]
        %v1492 = vcombine.low %v1486, %v1487
        %v1494 = vunpack.c.l.s4 1983009808
        %v1495 = vunpack.c.0.s8 %v1494
        %v1496 = vlaneseq
        %v1497 = vshrl.u32 %v1496, 7
        %v1498 = vsub.s32 %v1495, %v1497
        %v1499 = vrot.slane %v1492, %v1498
        %v1501 = vmul.f32 %v1489, %v1499
        %v1502 = vadd.f32 %v1414, %v1501
        %1503 = vrot.lane.b32.xlu0 %v495, 79
        %v1504 = vpop.permute.xlu0 %1503
        %1505 = vrot.lane.b32.xlu0 %v496, 79
        %v1506 = vpop.permute.xlu0 %1505
        %vm1507 = vcmp.lt.s32.totalorder %v502, 79
        %v1508 = vsel %vm1507, %v1504, %v1506
        %v1509 = vsel %vm1507, %v1506, %v1504
        %s1510 = scalar_lea.vmem [#allocation6], 184
        %v1511 = vld [vmem:[%s1510] sm:$0xf]
        %v1514 = vcombine.low %v1508, %v1509
        %v1516 = vunpack.c.l.s4 1983009808
        %v1517 = vunpack.c.0.s8 %v1516
        %v1518 = vlaneseq
        %v1519 = vshrl.u32 %v1518, 7
        %v1520 = vsub.s32 %v1517, %v1519
        %v1521 = vrot.slane %v1514, %v1520
        %v1523 = vmul.f32 %v1511, %v1521
        %v1524 = vadd.f32 %v1436, %v1523
        %1525 = vrot.lane.b32.xlu0 %v495, 78
        %v1526 = vpop.permute.xlu0 %1525
        %1527 = vrot.lane.b32.xlu0 %v496, 78
        %v1528 = vpop.permute.xlu0 %1527
        %vm1529 = vcmp.lt.s32.totalorder %v502, 78
        %v1530 = vsel %vm1529, %v1526, %v1528
        %v1531 = vsel %vm1529, %v1528, %v1526
        %s1532 = scalar_lea.vmem [#allocation6], 188
        %v1533 = vld [vmem:[%s1532] sm:$0xf]
        %v1536 = vcombine.low %v1530, %v1531
        %v1538 = vunpack.c.l.s4 1983009808
        %v1539 = vunpack.c.0.s8 %v1538
        %v1540 = vlaneseq
        %v1541 = vshrl.u32 %v1540, 7
        %v1542 = vsub.s32 %v1539, %v1541
        %v1543 = vrot.slane %v1536, %v1542
        %v1545 = vmul.f32 %v1533, %v1543
        %v1546 = vadd.f32 %v1458, %v1545
        %1547 = vrot.lane.b32.xlu0 %v495, 77
        %v1548 = vpop.permute.xlu0 %1547
        %1549 = vrot.lane.b32.xlu0 %v496, 77
        %v1550 = vpop.permute.xlu0 %1549
        %vm1551 = vcmp.lt.s32.totalorder %v502, 77
        %v1552 = vsel %vm1551, %v1548, %v1550
        %v1553 = vsel %vm1551, %v1550, %v1548
        %s1554 = scalar_lea.vmem [#allocation6], 192
        %v1555 = vld [vmem:[%s1554] sm:$0xf]
        %v1558 = vcombine.low %v1552, %v1553
        %v1560 = vunpack.c.l.s4 1983009808
        %v1561 = vunpack.c.0.s8 %v1560
        %v1562 = vlaneseq
        %v1563 = vshrl.u32 %v1562, 7
        %v1564 = vsub.s32 %v1561, %v1563
        %v1565 = vrot.slane %v1558, %v1564
        %v1567 = vmul.f32 %v1555, %v1565
        %v1568 = vadd.f32 %v1480, %v1567
        %v1569 = vadd.f32 %v1568, %v1502
        %v1570 = vadd.f32 %v1524, %v1546
        %v1571 = vadd.f32 %v1569, %v1570
        %v1574 = vunpack.c.l.s4 1983009808
        %v1575 = vunpack.c.0.s8 %v1574
        %v1576 = vlaneseq
        %v1577 = vshrl.u32 %v1576, 7
        %v1578 = vsub.s32 %v1575, %v1577
        %v1579 = vrot.slane %v1571, %v1578
        %v1580 = vcombine.high %v1579, %v1579
        %vm1583 = vcmask 1041408
        %v1584 = vsel %vm1583, %v1579, 0.0
        %v1585 = vrot.slane %v1584, 4
        %v1586 = vadd.f32 %v1584, %v1585
        %v1587 = vrot.slane %v1586, 2
        %v1588 = vadd.f32 %v1586, %v1587
        %v1589 = vrot.slane %v1588, 1
        %v1590 = vadd.f32 %v1588, %v1589
        %v1591 = vsel %vm1583, %v1580, 0.0
        %v1592 = vrot.slane %v1591, 4
        %v1593 = vadd.f32 %v1591, %v1592
        %v1594 = vrot.slane %v1593, 2
        %v1595 = vadd.f32 %v1593, %v1594
        %v1596 = vrot.slane %v1595, 1
        %v1597 = vadd.f32 %v1595, %v1596
        %s1598 = sld [smem:[#allocation2]]
        %v1599 = vstv %s1598
        %v1600 = vadd.f32 %v1590, %v1599
        %v1601 = vadd.f32 %v1597, %v1599
        %v1602 = vxor.u32 %v1600, 2147483648
        %v1603 = vxor.u32 %v1601, 2147483648
        %v1604 = vmul.f32 %v1602, 1.442695
        %v1605 = vpow.pop %v1604
        %v1606 = vmul.f32 %v1603, 1.442695
        %v1607 = vpow.pop %v1606
        %v1608 = vadd.f32 %v1605, 1.0
        %v1609 = vadd.f32 %v1607, 1.0
        %v1610 = vrcp.pop %v1608
        %v1611 = vmul.f32 1.0, %v1610
        %v1612 = vrcp.pop %v1609
        %v1613 = vmul.f32 1.0, %v1612
        %v1614 = vmul.f32 %v447, %v1611
        %v1615 = vmul.f32 %v448, %v1613
        %v1616 = vmul.f32 %v449, %v1611
        %v1617 = vmul.f32 %v450, %v1613
        %v1618 = vmul.f32 %v451, %v1611
        %v1619 = vmul.f32 %v452, %v1613
        %v1620 = vmul.f32 %v453, %v1611
        %v1621 = vmul.f32 %v454, %v1613
        %1622 = vst [vmem:[%s312] sm:$0xff] %v1614
        %1623 = vst [vmem:[%s312 + $0x8] sm:$0xff] %v1615
        %1624 = vst [vmem:[%s312 + $0x10] sm:$0xff] %v1616
        %1625 = vst [vmem:[%s312 + $0x18] sm:$0xff] %v1617
        %1626 = vst [vmem:[%s312 + $0x20] sm:$0xff] %v1618
        %1627 = vst [vmem:[%s312 + $0x28] sm:$0xff] %v1619
        %1628 = vst [vmem:[%s312 + $0x30] sm:$0xff] %v1620
        %1629 = vst [vmem:[%s312 + $0x38] sm:$0xff] %v1621
        %s1630 = sand.u32 %s186, 1
        %s1631 = scalar_lea.sflag [#allocation5], %s1630
        %s1632 = sand.u32 %s186, 1
        %s1633 = smul.addr %s1632, 64
        %s1634 = scalar_lea.vmem [#allocation8], %s1633
        // Predicated region
        $region57: #{tpu_custom_call.1} parent=47 // pred_check
          %p1635 = pneg %p196
        $region58: #{tpu_custom_call.1} parent=47 // pred_check_branch
          %1637 = sbr.rel (%p1635) target = $region60
        $region59: #{tpu_custom_call.1} parent=47 // pred_region
          %s1639 = ssub.s32 1024, 1024
          %1640 = vsyncadd %s1631, %s1639
          %s1641 = smul.addr %s26, 8
          %s1642 = smul.addr %s1641, 128
          %s1643 = scalar_lea.hbm %s7, %s1642
          %s1644 = sshll.u32 %s1634, 4
          %s1645 = int_to_ptr.vmem [resolvable:$true] %s1644
          %1650 = dma.vmem_to_hbm [thread:$0]  %s1645, 1024, %s1643, %s1631, 256, 256, 16
        $region60: #{tpu_custom_call.1} parent=47 // pred_fallthru
          _
      $region48: #{tpu_custom_call.1} parent=5 // pred_fallthru
        _
      %p1651 = scmp.le.s32.totalorder 2, %s21
      // Predicated region
      $region61: #{tpu_custom_call.1} parent=5 // pred_check
        %p1652 = pneg %p1651
      $region62: #{tpu_custom_call.1} parent=5 // pred_check_branch
        %1654 = sbr.rel (%p1652) target = $region64
      $region63: #{tpu_custom_call.1} parent=5 // pred_region
        %s1655 = ssub.s32 %s21, 2
        // Predicated region
        $region65: #{tpu_custom_call.1} parent=63 // pred_check
          %p1656 = pneg %p202
        $region66: #{tpu_custom_call.1} parent=63 // pred_check_branch
          %1658 = sbr.rel (%p1656) target = $region68
        $region67: #{tpu_custom_call.1} parent=63 // pred_region
          %s1659 = sand.u32 %s187, 1
          %s1660 = scalar_lea.sflag [#allocation5], %s1659
          %s1661 = sand.u32 %s187, 1
          %s1662 = smul.addr %s1661, 64
          %s1663 = scalar_lea.vmem [#allocation8], %s1662
          %1664 = dma.done %s1660, 1024
        $region68: #{tpu_custom_call.1} parent=63 // pred_fallthru
          _
      $region64: #{tpu_custom_call.1} parent=5 // pred_fallthru
        _
    $region6: #{tpu_custom_call.1} parent=1 // loop_footer
      %s25 = sadd.s32 1, %s21
    $region7: #{tpu_custom_call.1} parent=1 // loop_footer_branch
      %20 = sbr.rel target = $region3
    $region8: #{tpu_custom_call.1} parent=1 // loop_exit
      _
    %1665 = vsyncpa [#allocation4], 1
    %s1666 = scalar_lea.sflag [#allocation4], 1
    %1667 = vsyncpa %s1666, 1
    %1668 = vsyncpa [#allocation7], 1
    %1669 = vsyncpa [#allocation5], 1
    %s1670 = scalar_lea.sflag [#allocation5], 1
    %1671 = vsyncpa %s1670, 1

</llo_original>
